<compile_context>
chip_gen: v5e
topology: v5e:2x2
jax: 0.10.0
libtpu: 0.0.40
codegen_flags: <defaults>
</compile_context>

<pallas_src>
import functools
import math

import jax
import jax.numpy as jnp
from jax.experimental import pallas as pl
from jax.experimental.pallas import tpu as pltpu


def _mlp_kernel(z_ref,
                w1_ref, b1_ref,
                w2_ref, b2_ref,
                w3_ref, b3_ref,
                w4_ref, b4_ref,
                w5p_ref, b5_ref,
                out_ref, *, sub_chunk, bf16_epilogue):
    f32 = jnp.float32
    bf16 = jnp.bfloat16

    # Resident weights/biases: load (and cast) once per grid step, hoisted out of
    # the sub-chunk loop.
    w1 = w1_ref[...]                       # (H, 2)  f32
    b1 = b1_ref[...]                       # (H, 1)  f32
    w5p = w5p_ref[...]                     # (8, H)  bf16 (rows 2..7 are zero pad)
    b5 = b5_ref[...]                       # (2, 1)  f32
    if bf16_epilogue:
        hidden = tuple((w[...], b[...].astype(bf16))
                       for w, b in ((w2_ref, b2_ref), (w3_ref, b3_ref),
                                    (w4_ref, b4_ref)))
    else:
        hidden = tuple((w[...], b[...])
                       for w, b in ((w2_ref, b2_ref), (w3_ref, b3_ref),
                                    (w4_ref, b4_ref)))

    block = z_ref.shape[1]
    n_sub = block // sub_chunk

    # Fully-unrolled sub-chunk loop; each iteration touches one (·, sub_chunk)
    # lane slice and ends in a store, so its working set dies before the next.
    for c in range(n_sub):
        lo = c * sub_chunk
        z = z_ref[:, lo:lo + sub_chunk]                    # (2, S) f32

        # --- layer 1 (in=2): VPU broadcast FMAs, stays off the MXU ---
        h = w1[:, 0:1] * z[0:1, :] + w1[:, 1:2] * z[1:2, :] + b1
        h = jnp.maximum(h, 0.0).astype(bf16)               # (H, S) bf16

        # --- layers 2-4 (HxH): MXU, bf16 operands, f32 accumulate ---
        for w, b in hidden:
            y = jnp.dot(w, h, preferred_element_type=f32)  # (H, S) f32
            if bf16_epilogue:
                h = jnp.maximum(y.astype(bf16) + b, 0)     # bf16 epilogue (v6e/v7x)
            else:
                h = jnp.maximum(y + b, 0.0).astype(bf16)   # f32 epilogue (v5e)

        # --- layer 5 (out=2): also on the MXU; one coalesced (2, S) store ---
        y5 = jnp.dot(w5p, h, preferred_element_type=f32)   # (8, S) f32
        out_ref[:, lo:lo + sub_chunk] = y5[0:2, :] + b5    # (2, S) f32


@functools.partial(jax.jit,
                   static_argnames=("block_batch", "sub_chunk", "bf16_epilogue"))
def generator2_forward_fm(z_fm, params, *, block_batch=4096, sub_chunk=512,
                          bf16_epilogue=True):
    """Feature-major forward: z_fm (2, B) f32 -> (2, B) f32. No layout transposes."""
    assert z_fm.ndim == 2 and z_fm.shape[0] == 2
    assert block_batch % 128 == 0 and sub_chunk % 128 == 0
    assert block_batch % sub_chunk == 0
    B = z_fm.shape[1]

    # Trace-time tile selection: shrink the tile so the grid keeps >= 2 steps
    # whenever the batch allows it (v7x has 2 TensorCores sharing the "parallel"
    # grid axis; a single grid step would idle one of them).
    eff_block = block_batch
    while (eff_block > sub_chunk
           and (eff_block // 2) % sub_chunk == 0
           and -(-B // eff_block) < 2):
        eff_block //= 2
    n_blocks = max(1, -(-B // eff_block))
    Bp = n_blocks * eff_block

    zp = jnp.pad(z_fm.astype(jnp.float32), ((0, 0), (0, Bp - B)))

    # Layer-5 weight padded to 8 output rows (MXU/sublane-friendly M); the extra
    # zero rows are sliced off in-kernel.
    w5p = jnp.pad(params["w5"], ((0, 8 - params["w5"].shape[0]), (0, 0)))

    args = (zp,
            params["w1"], params["b1"],
            params["w2"], params["b2"],
            params["w3"], params["b3"],
            params["w4"], params["b4"],
            w5p, params["b5"])

    act_spec = pl.BlockSpec((2, eff_block), lambda i: (0, i))

    def resident(arr):
        # Whole array, same block every grid step -> stays VMEM-resident.
        # (If H is ever scaled into the thousands, add pipeline_mode=pl.Buffered(1)
        #  here so the never-changing weights are not double-buffered; irrelevant
        #  at H=32.)
        return pl.BlockSpec(arr.shape, lambda i: (0, 0))

    kernel = functools.partial(_mlp_kernel, sub_chunk=sub_chunk,
                               bf16_epilogue=bf16_epilogue)

    out = pl.pallas_call(
        kernel,
        out_shape=jax.ShapeDtypeStruct((2, Bp), jnp.float32),
        grid=(n_blocks,),
        in_specs=[act_spec] + [resident(a) for a in args[1:]],
        out_specs=pl.BlockSpec((2, eff_block), lambda i: (0, i)),
        compiler_params=pltpu.CompilerParams(
            dimension_semantics=("parallel",)),
    )(*args)

    return out[:, :B]


@functools.partial(jax.jit,
                   static_argnames=("block_batch", "sub_chunk", "bf16_epilogue"))
def generator2_forward(z, params, *, block_batch=4096, sub_chunk=512,
                       bf16_epilogue=True):
    """Module-parity forward: z (B, 2) -> (B, 2) (PyTorch Generator2 layout).

    Keeps one transpose per side; callers that can hold their data feature-major
    should call generator2_forward_fm directly and skip both HBM transpose passes.
    """
    out_fm = generator2_forward_fm(z.T, params, block_batch=block_batch,
                                   sub_chunk=sub_chunk,
                                   bf16_epilogue=bf16_epilogue)
    return out_fm.T


def init_generator2_params(key, nhidden):
    """PyTorch nn.Linear-style init (uniform +-1/sqrt(fan_in)).

    Storage layout (feature-major kernel):
      w1     : (H, 2) f32    (out, in)
      w2..w4 : (H, H) bf16   (out, in)   -- MXU operands
      w5     : (2, H) bf16   (out, in)   -- MXU operand (padded to 8 rows in wrapper)
      b1..b4 : (H, 1) f32
      b5     : (2, 1) f32
    """
    H = nhidden * 4

    def linear(k, fan_in, fan_out):
        kw, kb = jax.random.split(k)
        bound = 1.0 / math.sqrt(fan_in)
        w = jax.random.uniform(kw, (fan_out, fan_in), jnp.float32,
                               minval=-bound, maxval=bound)
        b = jax.random.uniform(kb, (fan_out, 1), jnp.float32,
                               minval=-bound, maxval=bound)
        return w, b

    keys = jax.random.split(key, 5)
    w1, b1 = linear(keys[0], 2, H)
    w2, b2 = linear(keys[1], H, H)
    w3, b3 = linear(keys[2], H, H)
    w4, b4 = linear(keys[3], H, H)
    w5, b5 = linear(keys[4], H, 2)

    return {
        "w1": w1, "b1": b1,
        "w2": w2.astype(jnp.bfloat16), "b2": b2,
        "w3": w3.astype(jnp.bfloat16), "b3": b3,
        "w4": w4.astype(jnp.bfloat16), "b4": b4,
        "w5": w5.astype(jnp.bfloat16), "b5": b5,
    }


def generator2_reference(z, params, *, match_kernel_precision=False,
                         bf16_epilogue=True):
    """Pure-JAX reference.

    match_kernel_precision=True mirrors the kernel's bf16 MXU / bf16-epilogue
    numerics; False is full-f32 math (weights upcast) for a looser semantic check.
    """
    f32, bf16 = jnp.float32, jnp.bfloat16
    x = z.astype(f32).T                                   # (2, B)
    w1, b1 = params["w1"], params["b1"]
    h = jax.nn.relu(w1[:, 0:1] * x[0:1, :] + w1[:, 1:2] * x[1:2, :] + b1)
    if match_kernel_precision:
        h = h.astype(bf16)
        for k in (2, 3, 4):
            w, b = params[f"w{k}"], params[f"b{k}"]
            y = jnp.dot(w, h, preferred_element_type=f32)
            if bf16_epilogue:
                h = jnp.maximum(y.astype(bf16) + b.astype(bf16), 0)
            else:
                h = jnp.maximum(y + b, 0.0).astype(bf16)
        out = jnp.dot(params["w5"], h, preferred_element_type=f32) + params["b5"]
    else:
        for k in (2, 3, 4):
            w, b = params[f"w{k}"].astype(f32), params[f"b{k}"]
            y = jnp.dot(w, h, precision=jax.lax.Precision.HIGHEST,
                        preferred_element_type=f32)
            h = jax.nn.relu(y + b)
        out = jnp.dot(params["w5"].astype(f32), h,
                      precision=jax.lax.Precision.HIGHEST,
                      preferred_element_type=f32) + params["b5"]
    return out.T                                          # (B, 2)


if __name__ == "__main__":
    key = jax.random.PRNGKey(0)
    nhidden = 8            # hidden width per layer = 32 (2 -> 32 -> 32 -> 32 -> 32 -> 2)
    batch = 1000           # non-multiple of the batch tile: exercises pad + multi-step grid

    key, kz = jax.random.split(key)
    z = jax.random.normal(kz, (batch, 2), dtype=jnp.float32)
    params = init_generator2_params(key, nhidden)

    ref_matched = generator2_reference(z, params, match_kernel_precision=True)
    ref_f32 = generator2_reference(z, params, match_kernel_precision=False)

    # Small tiles: exercises padding (1000 -> 1024), a 2-step grid, and a 4-deep
    # in-kernel sub-chunk loop.
    out = generator2_forward(z, params, block_batch=512, sub_chunk=128)
    out = jax.block_until_ready(out)
    assert out.shape == (batch, 2)
    assert jnp.allclose(out, ref_matched, atol=2e-3, rtol=2e-3), (
        "Pallas output mismatch vs bf16-matched reference: max abs err = "
        f"{float(jnp.max(jnp.abs(out - ref_matched)))}")
    assert jnp.allclose(out, ref_f32, atol=5e-2, rtol=5e-2), (
        "Pallas output mismatch vs f32 reference: max abs err = "
        f"{float(jnp.max(jnp.abs(out - ref_f32)))}")

    # Default (large-tile) config via the transpose-free feature-major entry point.
    out_fm = jax.block_until_ready(generator2_forward_fm(z.T, params))
    assert out_fm.shape == (2, batch)
    assert jnp.allclose(out_fm.T, ref_matched, atol=2e-3, rtol=2e-3), (
        "Feature-major Pallas output mismatch: max abs err = "
        f"{float(jnp.max(jnp.abs(out_fm.T - ref_matched)))}")

    # Tiny batch (B < sub-chunk) also works via padding.
    z_small = jax.random.normal(jax.random.PRNGKey(1), (8, 2), dtype=jnp.float32)
    out_small = jax.block_until_ready(
        generator2_forward(z_small, params, block_batch=512, sub_chunk=128))
    ref_small = generator2_reference(z_small, params, match_kernel_precision=True)
    assert jnp.allclose(out_small, ref_small, atol=2e-3, rtol=2e-3)

    print("KERNEL_OK")
</pallas_src>

<mosaic_0001>
module attributes {stable_mosaic.version = 11 : i64} {
  func.func @_mlp_kernel(%arg0: i32, %arg1: memref<2x512xf32, #tpu.memory_space<vmem>>, %arg2: memref<32x2xf32, #tpu.memory_space<vmem>>, %arg3: memref<32x1xf32, #tpu.memory_space<vmem>>, %arg4: memref<32x32xbf16, #tpu.memory_space<vmem>>, %arg5: memref<32x1xf32, #tpu.memory_space<vmem>>, %arg6: memref<32x32xbf16, #tpu.memory_space<vmem>>, %arg7: memref<32x1xf32, #tpu.memory_space<vmem>>, %arg8: memref<32x32xbf16, #tpu.memory_space<vmem>>, %arg9: memref<32x1xf32, #tpu.memory_space<vmem>>, %arg10: memref<8x32xbf16, #tpu.memory_space<vmem>>, %arg11: memref<2x1xf32, #tpu.memory_space<vmem>>, %arg12: memref<2x512xf32, #tpu.memory_space<vmem>>) attributes {dimension_semantics = [#tpu.dimension_semantics<parallel>], iteration_bounds = array<i64: 2>, scalar_prefetch = 0 : i64, scratch_operands = 0 : i64, tpu.core_type = #tpu.core_type<tc>, window_params = [{transform_indices = @transform_0, window_bounds = array<i64: 2, 512>}, {pipeline_mode = #tpu.pipeline_mode<synchronous>, transform_indices = @transform_1, window_bounds = array<i64: 32, 2>}, {pipeline_mode = #tpu.pipeline_mode<synchronous>, transform_indices = @transform_2, window_bounds = array<i64: 32, 1>}, {pipeline_mode = #tpu.pipeline_mode<synchronous>, transform_indices = @transform_3, window_bounds = array<i64: 32, 32>}, {pipeline_mode = #tpu.pipeline_mode<synchronous>, transform_indices = @transform_4, window_bounds = array<i64: 32, 1>}, {pipeline_mode = #tpu.pipeline_mode<synchronous>, transform_indices = @transform_5, window_bounds = array<i64: 32, 32>}, {pipeline_mode = #tpu.pipeline_mode<synchronous>, transform_indices = @transform_6, window_bounds = array<i64: 32, 1>}, {pipeline_mode = #tpu.pipeline_mode<synchronous>, transform_indices = @transform_7, window_bounds = array<i64: 32, 32>}, {pipeline_mode = #tpu.pipeline_mode<synchronous>, transform_indices = @transform_8, window_bounds = array<i64: 32, 1>}, {pipeline_mode = #tpu.pipeline_mode<synchronous>, transform_indices = @transform_9, window_bounds = array<i64: 8, 32>}, {pipeline_mode = #tpu.pipeline_mode<synchronous>, transform_indices = @transform_10, window_bounds = array<i64: 2, 1>}, {transform_indices = @transform_11, window_bounds = array<i64: 2, 512>}]} {
    %c0 = arith.constant 0 : index
    %c0_0 = arith.constant 0 : index
    %0 = vector.load %arg2[%c0, %c0_0] : memref<32x2xf32, #tpu.memory_space<vmem>>, vector<32x2xf32>
    %c0_1 = arith.constant 0 : index
    %c0_2 = arith.constant 0 : index
    %1 = vector.load %arg3[%c0_1, %c0_2] : memref<32x1xf32, #tpu.memory_space<vmem>>, vector<32x1xf32>
    %c0_3 = arith.constant 0 : index
    %c0_4 = arith.constant 0 : index
    %2 = vector.load %arg10[%c0_3, %c0_4] : memref<8x32xbf16, #tpu.memory_space<vmem>>, vector<8x32xbf16>
    %c0_5 = arith.constant 0 : index
    %c0_6 = arith.constant 0 : index
    %3 = vector.load %arg11[%c0_5, %c0_6] : memref<2x1xf32, #tpu.memory_space<vmem>>, vector<2x1xf32>
    %c0_7 = arith.constant 0 : index
    %c0_8 = arith.constant 0 : index
    %4 = vector.load %arg4[%c0_7, %c0_8] : memref<32x32xbf16, #tpu.memory_space<vmem>>, vector<32x32xbf16>
    %c0_9 = arith.constant 0 : index
    %c0_10 = arith.constant 0 : index
    %5 = vector.load %arg5[%c0_9, %c0_10] : memref<32x1xf32, #tpu.memory_space<vmem>>, vector<32x1xf32>
    %6 = arith.truncf %5 : vector<32x1xf32> to vector<32x1xbf16>
    %c0_11 = arith.constant 0 : index
    %c0_12 = arith.constant 0 : index
    %7 = vector.load %arg6[%c0_11, %c0_12] : memref<32x32xbf16, #tpu.memory_space<vmem>>, vector<32x32xbf16>
    %c0_13 = arith.constant 0 : index
    %c0_14 = arith.constant 0 : index
    %8 = vector.load %arg7[%c0_13, %c0_14] : memref<32x1xf32, #tpu.memory_space<vmem>>, vector<32x1xf32>
    %9 = arith.truncf %8 : vector<32x1xf32> to vector<32x1xbf16>
    %c0_15 = arith.constant 0 : index
    %c0_16 = arith.constant 0 : index
    %10 = vector.load %arg8[%c0_15, %c0_16] : memref<32x32xbf16, #tpu.memory_space<vmem>>, vector<32x32xbf16>
    %c0_17 = arith.constant 0 : index
    %c0_18 = arith.constant 0 : index
    %11 = vector.load %arg9[%c0_17, %c0_18] : memref<32x1xf32, #tpu.memory_space<vmem>>, vector<32x1xf32>
    %12 = arith.truncf %11 : vector<32x1xf32> to vector<32x1xbf16>
    %c0_19 = arith.constant 0 : index
    %c0_20 = arith.constant 0 : index
    %13 = vector.load %arg1[%c0_19, %c0_20] : memref<2x512xf32, #tpu.memory_space<vmem>>, vector<2x128xf32>
    %14 = vector.extract_strided_slice %0 {offsets = [0, 0], sizes = [32, 1], strides = [1, 1]} : vector<32x2xf32> to vector<32x1xf32>
    %15 = vector.extract_strided_slice %13 {offsets = [0, 0], sizes = [1, 128], strides = [1, 1]} : vector<2x128xf32> to vector<1x128xf32>
    %16 = vector.broadcast %14 : vector<32x1xf32> to vector<32x128xf32>
    %17 = vector.broadcast %15 : vector<1x128xf32> to vector<32x128xf32>
    %18 = arith.mulf %16, %17 : vector<32x128xf32>
    %19 = vector.extract_strided_slice %0 {offsets = [0, 1], sizes = [32, 1], strides = [1, 1]} : vector<32x2xf32> to vector<32x1xf32>
    %20 = vector.extract_strided_slice %13 {offsets = [1, 0], sizes = [1, 128], strides = [1, 1]} : vector<2x128xf32> to vector<1x128xf32>
    %21 = vector.broadcast %19 : vector<32x1xf32> to vector<32x128xf32>
    %22 = vector.broadcast %20 : vector<1x128xf32> to vector<32x128xf32>
    %23 = arith.mulf %21, %22 : vector<32x128xf32>
    %24 = arith.addf %18, %23 : vector<32x128xf32>
    %25 = vector.broadcast %1 : vector<32x1xf32> to vector<32x128xf32>
    %26 = arith.addf %24, %25 : vector<32x128xf32>
    %cst = arith.constant 0.000000e+00 : f32
    %27 = vector.broadcast %cst : f32 to vector<32x128xf32>
    %28 = arith.maximumf %26, %27 : vector<32x128xf32>
    %29 = arith.truncf %28 : vector<32x128xf32> to vector<32x128xbf16>
    %cst_21 = arith.constant dense<0.000000e+00> : vector<32x128xf32>
    %30 = tpu.matmul %4, %29, %cst_21 {dimension_numbers = #tpu.dot_dimension_numbers<[1], [0], [0], [1], [0, 0, 1, 1], [], []>} : vector<32x32xbf16>, vector<32x128xbf16>, vector<32x128xf32> -> vector<32x128xf32>
    %31 = arith.truncf %30 : vector<32x128xf32> to vector<32x128xbf16>
    %32 = vector.broadcast %6 : vector<32x1xbf16> to vector<32x128xbf16>
    %33 = arith.addf %31, %32 : vector<32x128xbf16>
    %cst_22 = arith.constant 0.000000e+00 : bf16
    %34 = vector.broadcast %cst_22 : bf16 to vector<32x128xbf16>
    %35 = arith.maximumf %33, %34 : vector<32x128xbf16>
    %cst_23 = arith.constant dense<0.000000e+00> : vector<32x128xf32>
    %36 = tpu.matmul %7, %35, %cst_23 {dimension_numbers = #tpu.dot_dimension_numbers<[1], [0], [0], [1], [0, 0, 1, 1], [], []>} : vector<32x32xbf16>, vector<32x128xbf16>, vector<32x128xf32> -> vector<32x128xf32>
    %37 = arith.truncf %36 : vector<32x128xf32> to vector<32x128xbf16>
    %38 = vector.broadcast %9 : vector<32x1xbf16> to vector<32x128xbf16>
    %39 = arith.addf %37, %38 : vector<32x128xbf16>
    %cst_24 = arith.constant 0.000000e+00 : bf16
    %40 = vector.broadcast %cst_24 : bf16 to vector<32x128xbf16>
    %41 = arith.maximumf %39, %40 : vector<32x128xbf16>
    %cst_25 = arith.constant dense<0.000000e+00> : vector<32x128xf32>
    %42 = tpu.matmul %10, %41, %cst_25 {dimension_numbers = #tpu.dot_dimension_numbers<[1], [0], [0], [1], [0, 0, 1, 1], [], []>} : vector<32x32xbf16>, vector<32x128xbf16>, vector<32x128xf32> -> vector<32x128xf32>
    %43 = arith.truncf %42 : vector<32x128xf32> to vector<32x128xbf16>
    %44 = vector.broadcast %12 : vector<32x1xbf16> to vector<32x128xbf16>
    %45 = arith.addf %43, %44 : vector<32x128xbf16>
    %cst_26 = arith.constant 0.000000e+00 : bf16
    %46 = vector.broadcast %cst_26 : bf16 to vector<32x128xbf16>
    %47 = arith.maximumf %45, %46 : vector<32x128xbf16>
    %cst_27 = arith.constant dense<0.000000e+00> : vector<8x128xf32>
    %48 = tpu.matmul %2, %47, %cst_27 {dimension_numbers = #tpu.dot_dimension_numbers<[1], [0], [0], [1], [0, 0, 1, 1], [], []>} : vector<8x32xbf16>, vector<32x128xbf16>, vector<8x128xf32> -> vector<8x128xf32>
    %49 = vector.extract_strided_slice %48 {offsets = [0, 0], sizes = [2, 128], strides = [1, 1]} : vector<8x128xf32> to vector<2x128xf32>
    %50 = vector.broadcast %3 : vector<2x1xf32> to vector<2x128xf32>
    %51 = arith.addf %49, %50 : vector<2x128xf32>
    %c0_28 = arith.constant 0 : index
    %c0_29 = arith.constant 0 : index
    %52 = vector.load %arg12[%c0_28, %c0_29] : memref<2x512xf32, #tpu.memory_space<vmem>>, vector<2x128xf32>
    tpu.vector_store %arg12[%c0_28, %c0_29], %51 {strides = array<i32>} : memref<2x512xf32, #tpu.memory_space<vmem>>, vector<2x128xf32>,
    %c0_30 = arith.constant 0 : index
    %c128 = arith.constant 128 : index
    %53 = vector.load %arg1[%c0_30, %c128] : memref<2x512xf32, #tpu.memory_space<vmem>>, vector<2x128xf32>
    %54 = vector.extract_strided_slice %0 {offsets = [0, 0], sizes = [32, 1], strides = [1, 1]} : vector<32x2xf32> to vector<32x1xf32>
    %55 = vector.extract_strided_slice %53 {offsets = [0, 0], sizes = [1, 128], strides = [1, 1]} : vector<2x128xf32> to vector<1x128xf32>
    %56 = vector.broadcast %54 : vector<32x1xf32> to vector<32x128xf32>
    %57 = vector.broadcast %55 : vector<1x128xf32> to vector<32x128xf32>
    %58 = arith.mulf %56, %57 : vector<32x128xf32>
    %59 = vector.extract_strided_slice %0 {offsets = [0, 1], sizes = [32, 1], strides = [1, 1]} : vector<32x2xf32> to vector<32x1xf32>
    %60 = vector.extract_strided_slice %53 {offsets = [1, 0], sizes = [1, 128], strides = [1, 1]} : vector<2x128xf32> to vector<1x128xf32>
    %61 = vector.broadcast %59 : vector<32x1xf32> to vector<32x128xf32>
    %62 = vector.broadcast %60 : vector<1x128xf32> to vector<32x128xf32>
    %63 = arith.mulf %61, %62 : vector<32x128xf32>
    %64 = arith.addf %58, %63 : vector<32x128xf32>
    %65 = vector.broadcast %1 : vector<32x1xf32> to vector<32x128xf32>
    %66 = arith.addf %64, %65 : vector<32x128xf32>
    %cst_31 = arith.constant 0.000000e+00 : f32
    %67 = vector.broadcast %cst_31 : f32 to vector<32x128xf32>
    %68 = arith.maximumf %66, %67 : vector<32x128xf32>
    %69 = arith.truncf %68 : vector<32x128xf32> to vector<32x128xbf16>
    %cst_32 = arith.constant dense<0.000000e+00> : vector<32x128xf32>
    %70 = tpu.matmul %4, %69, %cst_32 {dimension_numbers = #tpu.dot_dimension_numbers<[1], [0], [0], [1], [0, 0, 1, 1], [], []>} : vector<32x32xbf16>, vector<32x128xbf16>, vector<32x128xf32> -> vector<32x128xf32>
    %71 = arith.truncf %70 : vector<32x128xf32> to vector<32x128xbf16>
    %72 = vector.broadcast %6 : vector<32x1xbf16> to vector<32x128xbf16>
    %73 = arith.addf %71, %72 : vector<32x128xbf16>
    %cst_33 = arith.constant 0.000000e+00 : bf16
    %74 = vector.broadcast %cst_33 : bf16 to vector<32x128xbf16>
    %75 = arith.maximumf %73, %74 : vector<32x128xbf16>
    %cst_34 = arith.constant dense<0.000000e+00> : vector<32x128xf32>
    %76 = tpu.matmul %7, %75, %cst_34 {dimension_numbers = #tpu.dot_dimension_numbers<[1], [0], [0], [1], [0, 0, 1, 1], [], []>} : vector<32x32xbf16>, vector<32x128xbf16>, vector<32x128xf32> -> vector<32x128xf32>
    %77 = arith.truncf %76 : vector<32x128xf32> to vector<32x128xbf16>
    %78 = vector.broadcast %9 : vector<32x1xbf16> to vector<32x128xbf16>
    %79 = arith.addf %77, %78 : vector<32x128xbf16>
    %cst_35 = arith.constant 0.000000e+00 : bf16
    %80 = vector.broadcast %cst_35 : bf16 to vector<32x128xbf16>
    %81 = arith.maximumf %79, %80 : vector<32x128xbf16>
    %cst_36 = arith.constant dense<0.000000e+00> : vector<32x128xf32>
    %82 = tpu.matmul %10, %81, %cst_36 {dimension_numbers = #tpu.dot_dimension_numbers<[1], [0], [0], [1], [0, 0, 1, 1], [], []>} : vector<32x32xbf16>, vector<32x128xbf16>, vector<32x128xf32> -> vector<32x128xf32>
    %83 = arith.truncf %82 : vector<32x128xf32> to vector<32x128xbf16>
    %84 = vector.broadcast %12 : vector<32x1xbf16> to vector<32x128xbf16>
    %85 = arith.addf %83, %84 : vector<32x128xbf16>
    %cst_37 = arith.constant 0.000000e+00 : bf16
    %86 = vector.broadcast %cst_37 : bf16 to vector<32x128xbf16>
    %87 = arith.maximumf %85, %86 : vector<32x128xbf16>
    %cst_38 = arith.constant dense<0.000000e+00> : vector<8x128xf32>
    %88 = tpu.matmul %2, %87, %cst_38 {dimension_numbers = #tpu.dot_dimension_numbers<[1], [0], [0], [1], [0, 0, 1, 1], [], []>} : vector<8x32xbf16>, vector<32x128xbf16>, vector<8x128xf32> -> vector<8x128xf32>
    %89 = vector.extract_strided_slice %88 {offsets = [0, 0], sizes = [2, 128], strides = [1, 1]} : vector<8x128xf32> to vector<2x128xf32>
    %90 = vector.broadcast %3 : vector<2x1xf32> to vector<2x128xf32>
    %91 = arith.addf %89, %90 : vector<2x128xf32>
    %c0_39 = arith.constant 0 : index
    %c128_40 = arith.constant 128 : index
    %92 = vector.load %arg12[%c0_39, %c128_40] : memref<2x512xf32, #tpu.memory_space<vmem>>, vector<2x128xf32>
    tpu.vector_store %arg12[%c0_39, %c128_40], %91 {strides = array<i32>} : memref<2x512xf32, #tpu.memory_space<vmem>>, vector<2x128xf32>,
    %c0_41 = arith.constant 0 : index
    %c256 = arith.constant 256 : index
    %93 = vector.load %arg1[%c0_41, %c256] : memref<2x512xf32, #tpu.memory_space<vmem>>, vector<2x128xf32>
    %94 = vector.extract_strided_slice %0 {offsets = [0, 0], sizes = [32, 1], strides = [1, 1]} : vector<32x2xf32> to vector<32x1xf32>
    %95 = vector.extract_strided_slice %93 {offsets = [0, 0], sizes = [1, 128], strides = [1, 1]} : vector<2x128xf32> to vector<1x128xf32>
    %96 = vector.broadcast %94 : vector<32x1xf32> to vector<32x128xf32>
    %97 = vector.broadcast %95 : vector<1x128xf32> to vector<32x128xf32>
    %98 = arith.mulf %96, %97 : vector<32x128xf32>
    %99 = vector.extract_strided_slice %0 {offsets = [0, 1], sizes = [32, 1], strides = [1, 1]} : vector<32x2xf32> to vector<32x1xf32>
    %100 = vector.extract_strided_slice %93 {offsets = [1, 0], sizes = [1, 128], strides = [1, 1]} : vector<2x128xf32> to vector<1x128xf32>
    %101 = vector.broadcast %99 : vector<32x1xf32> to vector<32x128xf32>
    %102 = vector.broadcast %100 : vector<1x128xf32> to vector<32x128xf32>
    %103 = arith.mulf %101, %102 : vector<32x128xf32>
    %104 = arith.addf %98, %103 : vector<32x128xf32>
    %105 = vector.broadcast %1 : vector<32x1xf32> to vector<32x128xf32>
    %106 = arith.addf %104, %105 : vector<32x128xf32>
    %cst_42 = arith.constant 0.000000e+00 : f32
    %107 = vector.broadcast %cst_42 : f32 to vector<32x128xf32>
    %108 = arith.maximumf %106, %107 : vector<32x128xf32>
    %109 = arith.truncf %108 : vector<32x128xf32> to vector<32x128xbf16>
    %cst_43 = arith.constant dense<0.000000e+00> : vector<32x128xf32>
    %110 = tpu.matmul %4, %109, %cst_43 {dimension_numbers = #tpu.dot_dimension_numbers<[1], [0], [0], [1], [0, 0, 1, 1], [], []>} : vector<32x32xbf16>, vector<32x128xbf16>, vector<32x128xf32> -> vector<32x128xf32>
    %111 = arith.truncf %110 : vector<32x128xf32> to vector<32x128xbf16>
    %112 = vector.broadcast %6 : vector<32x1xbf16> to vector<32x128xbf16>
    %113 = arith.addf %111, %112 : vector<32x128xbf16>
    %cst_44 = arith.constant 0.000000e+00 : bf16
    %114 = vector.broadcast %cst_44 : bf16 to vector<32x128xbf16>
    %115 = arith.maximumf %113, %114 : vector<32x128xbf16>
    %cst_45 = arith.constant dense<0.000000e+00> : vector<32x128xf32>
    %116 = tpu.matmul %7, %115, %cst_45 {dimension_numbers = #tpu.dot_dimension_numbers<[1], [0], [0], [1], [0, 0, 1, 1], [], []>} : vector<32x32xbf16>, vector<32x128xbf16>, vector<32x128xf32> -> vector<32x128xf32>
    %117 = arith.truncf %116 : vector<32x128xf32> to vector<32x128xbf16>
    %118 = vector.broadcast %9 : vector<32x1xbf16> to vector<32x128xbf16>
    %119 = arith.addf %117, %118 : vector<32x128xbf16>
    %cst_46 = arith.constant 0.000000e+00 : bf16
    %120 = vector.broadcast %cst_46 : bf16 to vector<32x128xbf16>
    %121 = arith.maximumf %119, %120 : vector<32x128xbf16>
    %cst_47 = arith.constant dense<0.000000e+00> : vector<32x128xf32>
    %122 = tpu.matmul %10, %121, %cst_47 {dimension_numbers = #tpu.dot_dimension_numbers<[1], [0], [0], [1], [0, 0, 1, 1], [], []>} : vector<32x32xbf16>, vector<32x128xbf16>, vector<32x128xf32> -> vector<32x128xf32>
    %123 = arith.truncf %122 : vector<32x128xf32> to vector<32x128xbf16>
    %124 = vector.broadcast %12 : vector<32x1xbf16> to vector<32x128xbf16>
    %125 = arith.addf %123, %124 : vector<32x128xbf16>
    %cst_48 = arith.constant 0.000000e+00 : bf16
    %126 = vector.broadcast %cst_48 : bf16 to vector<32x128xbf16>
    %127 = arith.maximumf %125, %126 : vector<32x128xbf16>
    %cst_49 = arith.constant dense<0.000000e+00> : vector<8x128xf32>
    %128 = tpu.matmul %2, %127, %cst_49 {dimension_numbers = #tpu.dot_dimension_numbers<[1], [0], [0], [1], [0, 0, 1, 1], [], []>} : vector<8x32xbf16>, vector<32x128xbf16>, vector<8x128xf32> -> vector<8x128xf32>
    %129 = vector.extract_strided_slice %128 {offsets = [0, 0], sizes = [2, 128], strides = [1, 1]} : vector<8x128xf32> to vector<2x128xf32>
    %130 = vector.broadcast %3 : vector<2x1xf32> to vector<2x128xf32>
    %131 = arith.addf %129, %130 : vector<2x128xf32>
    %c0_50 = arith.constant 0 : index
    %c256_51 = arith.constant 256 : index
    %132 = vector.load %arg12[%c0_50, %c256_51] : memref<2x512xf32, #tpu.memory_space<vmem>>, vector<2x128xf32>
    tpu.vector_store %arg12[%c0_50, %c256_51], %131 {strides = array<i32>} : memref<2x512xf32, #tpu.memory_space<vmem>>, vector<2x128xf32>,
    %c0_52 = arith.constant 0 : index
    %c384 = arith.constant 384 : index
    %133 = vector.load %arg1[%c0_52, %c384] : memref<2x512xf32, #tpu.memory_space<vmem>>, vector<2x128xf32>
    %134 = vector.extract_strided_slice %0 {offsets = [0, 0], sizes = [32, 1], strides = [1, 1]} : vector<32x2xf32> to vector<32x1xf32>
    %135 = vector.extract_strided_slice %133 {offsets = [0, 0], sizes = [1, 128], strides = [1, 1]} : vector<2x128xf32> to vector<1x128xf32>
    %136 = vector.broadcast %134 : vector<32x1xf32> to vector<32x128xf32>
    %137 = vector.broadcast %135 : vector<1x128xf32> to vector<32x128xf32>
    %138 = arith.mulf %136, %137 : vector<32x128xf32>
    %139 = vector.extract_strided_slice %0 {offsets = [0, 1], sizes = [32, 1], strides = [1, 1]} : vector<32x2xf32> to vector<32x1xf32>
    %140 = vector.extract_strided_slice %133 {offsets = [1, 0], sizes = [1, 128], strides = [1, 1]} : vector<2x128xf32> to vector<1x128xf32>
    %141 = vector.broadcast %139 : vector<32x1xf32> to vector<32x128xf32>
    %142 = vector.broadcast %140 : vector<1x128xf32> to vector<32x128xf32>
    %143 = arith.mulf %141, %142 : vector<32x128xf32>
    %144 = arith.addf %138, %143 : vector<32x128xf32>
    %145 = vector.broadcast %1 : vector<32x1xf32> to vector<32x128xf32>
    %146 = arith.addf %144, %145 : vector<32x128xf32>
    %cst_53 = arith.constant 0.000000e+00 : f32
    %147 = vector.broadcast %cst_53 : f32 to vector<32x128xf32>
    %148 = arith.maximumf %146, %147 : vector<32x128xf32>
    %149 = arith.truncf %148 : vector<32x128xf32> to vector<32x128xbf16>
    %cst_54 = arith.constant dense<0.000000e+00> : vector<32x128xf32>
    %150 = tpu.matmul %4, %149, %cst_54 {dimension_numbers = #tpu.dot_dimension_numbers<[1], [0], [0], [1], [0, 0, 1, 1], [], []>} : vector<32x32xbf16>, vector<32x128xbf16>, vector<32x128xf32> -> vector<32x128xf32>
    %151 = arith.truncf %150 : vector<32x128xf32> to vector<32x128xbf16>
    %152 = vector.broadcast %6 : vector<32x1xbf16> to vector<32x128xbf16>
    %153 = arith.addf %151, %152 : vector<32x128xbf16>
    %cst_55 = arith.constant 0.000000e+00 : bf16
    %154 = vector.broadcast %cst_55 : bf16 to vector<32x128xbf16>
    %155 = arith.maximumf %153, %154 : vector<32x128xbf16>
    %cst_56 = arith.constant dense<0.000000e+00> : vector<32x128xf32>
    %156 = tpu.matmul %7, %155, %cst_56 {dimension_numbers = #tpu.dot_dimension_numbers<[1], [0], [0], [1], [0, 0, 1, 1], [], []>} : vector<32x32xbf16>, vector<32x128xbf16>, vector<32x128xf32> -> vector<32x128xf32>
    %157 = arith.truncf %156 : vector<32x128xf32> to vector<32x128xbf16>
    %158 = vector.broadcast %9 : vector<32x1xbf16> to vector<32x128xbf16>
    %159 = arith.addf %157, %158 : vector<32x128xbf16>
    %cst_57 = arith.constant 0.000000e+00 : bf16
    %160 = vector.broadcast %cst_57 : bf16 to vector<32x128xbf16>
    %161 = arith.maximumf %159, %160 : vector<32x128xbf16>
    %cst_58 = arith.constant dense<0.000000e+00> : vector<32x128xf32>
    %162 = tpu.matmul %10, %161, %cst_58 {dimension_numbers = #tpu.dot_dimension_numbers<[1], [0], [0], [1], [0, 0, 1, 1], [], []>} : vector<32x32xbf16>, vector<32x128xbf16>, vector<32x128xf32> -> vector<32x128xf32>
    %163 = arith.truncf %162 : vector<32x128xf32> to vector<32x128xbf16>
    %164 = vector.broadcast %12 : vector<32x1xbf16> to vector<32x128xbf16>
    %165 = arith.addf %163, %164 : vector<32x128xbf16>
    %cst_59 = arith.constant 0.000000e+00 : bf16
    %166 = vector.broadcast %cst_59 : bf16 to vector<32x128xbf16>
    %167 = arith.maximumf %165, %166 : vector<32x128xbf16>
    %cst_60 = arith.constant dense<0.000000e+00> : vector<8x128xf32>
    %168 = tpu.matmul %2, %167, %cst_60 {dimension_numbers = #tpu.dot_dimension_numbers<[1], [0], [0], [1], [0, 0, 1, 1], [], []>} : vector<8x32xbf16>, vector<32x128xbf16>, vector<8x128xf32> -> vector<8x128xf32>
    %169 = vector.extract_strided_slice %168 {offsets = [0, 0], sizes = [2, 128], strides = [1, 1]} : vector<8x128xf32> to vector<2x128xf32>
    %170 = vector.broadcast %3 : vector<2x1xf32> to vector<2x128xf32>
    %171 = arith.addf %169, %170 : vector<2x128xf32>
    %c0_61 = arith.constant 0 : index
    %c384_62 = arith.constant 384 : index
    %172 = vector.load %arg12[%c0_61, %c384_62] : memref<2x512xf32, #tpu.memory_space<vmem>>, vector<2x128xf32>
    tpu.vector_store %arg12[%c0_61, %c384_62], %171 {strides = array<i32>} : memref<2x512xf32, #tpu.memory_space<vmem>>, vector<2x128xf32>,
    return
  }
  func.func @transform_0(%arg0: i32) -> (i32, i32) {
    %c0_i32 = arith.constant 0 : i32
    %c0_i32_0 = arith.constant 0 : i32
    return %c0_i32, %arg0 : i32, i32
  }
  func.func @transform_1(%arg0: i32) -> (i32, i32) {
    %c0_i32 = arith.constant 0 : i32
    %c0_i32_0 = arith.constant 0 : i32
    %c0_i32_1 = arith.constant 0 : i32
    return %c0_i32, %c0_i32_0 : i32, i32
  }
  func.func @transform_2(%arg0: i32) -> (i32, i32) {
    %c0_i32 = arith.constant 0 : i32
    %c0_i32_0 = arith.constant 0 : i32
    %c0_i32_1 = arith.constant 0 : i32
    return %c0_i32, %c0_i32_0 : i32, i32
  }
  func.func @transform_3(%arg0: i32) -> (i32, i32) {
    %c0_i32 = arith.constant 0 : i32
    %c0_i32_0 = arith.constant 0 : i32
    %c0_i32_1 = arith.constant 0 : i32
    return %c0_i32, %c0_i32_0 : i32, i32
  }
  func.func @transform_4(%arg0: i32) -> (i32, i32) {
    %c0_i32 = arith.constant 0 : i32
    %c0_i32_0 = arith.constant 0 : i32
    %c0_i32_1 = arith.constant 0 : i32
    return %c0_i32, %c0_i32_0 : i32, i32
  }
  func.func @transform_5(%arg0: i32) -> (i32, i32) {
    %c0_i32 = arith.constant 0 : i32
    %c0_i32_0 = arith.constant 0 : i32
    %c0_i32_1 = arith.constant 0 : i32
    return %c0_i32, %c0_i32_0 : i32, i32
  }
  func.func @transform_6(%arg0: i32) -> (i32, i32) {
    %c0_i32 = arith.constant 0 : i32
    %c0_i32_0 = arith.constant 0 : i32
    %c0_i32_1 = arith.constant 0 : i32
    return %c0_i32, %c0_i32_0 : i32, i32
  }
  func.func @transform_7(%arg0: i32) -> (i32, i32) {
    %c0_i32 = arith.constant 0 : i32
    %c0_i32_0 = arith.constant 0 : i32
    %c0_i32_1 = arith.constant 0 : i32
    return %c0_i32, %c0_i32_0 : i32, i32
  }
  func.func @transform_8(%arg0: i32) -> (i32, i32) {
    %c0_i32 = arith.constant 0 : i32
    %c0_i32_0 = arith.constant 0 : i32
    %c0_i32_1 = arith.constant 0 : i32
    return %c0_i32, %c0_i32_0 : i32, i32
  }
  func.func @transform_9(%arg0: i32) -> (i32, i32) {
    %c0_i32 = arith.constant 0 : i32
    %c0_i32_0 = arith.constant 0 : i32
    %c0_i32_1 = arith.constant 0 : i32
    return %c0_i32, %c0_i32_0 : i32, i32
  }
  func.func @transform_10(%arg0: i32) -> (i32, i32) {
    %c0_i32 = arith.constant 0 : i32
    %c0_i32_0 = arith.constant 0 : i32
    %c0_i32_1 = arith.constant 0 : i32
    return %c0_i32, %c0_i32_0 : i32, i32
  }
  func.func @transform_11(%arg0: i32) -> (i32, i32) {
    %c0_i32 = arith.constant 0 : i32
    %c0_i32_0 = arith.constant 0 : i32
    return %c0_i32, %arg0 : i32, i32
  }
}

</mosaic_0001>

<llo_original>
// kernel: generator2_forward_fm.1
$region0: #{generator2_forward_fm.1}
  #allocation0 [shape = 'u32[]', space=smem, size = 0x4, offset = 0x4, fixed_abs, tag = 'smem constant byte address 0x4 - core index']
  #allocation1 [shape = 'u32[72,128]{1,0:T(1,128)}', space=vmem, size = 0x9000, scoped, tag = 'internal scratch']
  %s0 = inlined_call_operand.vmem [shape: f32[2,1024], index: 0, kind: input, shape index: {}]
  %s1 = inlined_call_operand.vmem [shape: f32[32,2], index: 1, kind: input, shape index: {}]
  %s2 = inlined_call_operand.vmem [shape: f32[32,1], index: 2, kind: input, shape index: {}]
  %s3 = inlined_call_operand.vmem [shape: bf16[32,32], index: 3, kind: input, shape index: {}]
  %s4 = inlined_call_operand.vmem [shape: f32[32,1], index: 4, kind: input, shape index: {}]
  %s5 = inlined_call_operand.vmem [shape: bf16[32,32], index: 5, kind: input, shape index: {}]
  %s6 = inlined_call_operand.vmem [shape: f32[32,1], index: 6, kind: input, shape index: {}]
  %s7 = inlined_call_operand.vmem [shape: bf16[32,32], index: 7, kind: input, shape index: {}]
  %s8 = inlined_call_operand.vmem [shape: f32[32,1], index: 8, kind: input, shape index: {}]
  %s9 = inlined_call_operand.vmem [shape: bf16[8,32], index: 9, kind: input, shape index: {}]
  %s10 = inlined_call_operand.vmem [shape: f32[2,1], index: 10, kind: input, shape index: {}]
  %s11 = inlined_call_operand.hbm [shape: f32[2,1024], index: 11, kind: output, shape index: {}]
  %s12 = sld [smem:[#allocation0]]
  $region77: #{generator2_forward_fm.1} parent=0
    _
  %s14 = ssub.s32 1, %s12
  %s15 = scalar_select 0, %s14, %s12
  $region1: #{generator2_forward_fm.1} parent=0
    #allocation2 [shape = 'u8[8192]{0}', space=vmem, size = 0x2000, scoped, tag = 'output window, operand 0']
    #allocation3 [shape = 's32[2]{0}', space=sflag, size = 0x8, scoped, tag = 'scoped memory for generator2_forward_fm.1']
    %16 = vsyncpa [#allocation3], 0
    %s17 = scalar_lea.sflag [#allocation3], 1
    %18 = vsyncpa %s17, 0
    loop: start=0, step=1, limit=4
    $region2: #{generator2_forward_fm.1} parent=1 // loop_pre_header
      _
    $region3: #{generator2_forward_fm.1} parent=1 // loop_header
      %s20 = sphi 0, %s24
      %p21 = scmp.ge.s32.totalorder %s20, 4
      %s30 = sphi 0, %s32
      %s33 = sphi 0, %s30
      %s34 = sphi 0, %s33
      %s50 = sphi 0, %s34
      %s54 = sphi 0, %s54
      %s56 = sphi 0, %s54
      %s57 = sphi 0, %s56
      %s71 = sphi 0, %s57
      %s75 = sphi 0, %s75
      %s77 = sphi 0, %s75
      %s78 = sphi 0, %s77
      %s92 = sphi 0, %s78
      %s96 = sphi 0, %s96
      %s98 = sphi 0, %s96
      %s99 = sphi 0, %s98
      %s113 = sphi 0, %s99
      %s117 = sphi 0, %s117
      %s119 = sphi 0, %s117
      %s120 = sphi 0, %s119
      %s134 = sphi 0, %s120
      %s138 = sphi 0, %s138
      %s140 = sphi 0, %s138
      %s141 = sphi 0, %s140
      %s155 = sphi 0, %s141
      %s159 = sphi 0, %s159
      %s161 = sphi 0, %s159
      %s162 = sphi 0, %s161
      %s176 = sphi 0, %s162
      %s180 = sphi 0, %s180
      %s182 = sphi 0, %s180
      %s183 = sphi 0, %s182
      %s197 = sphi 0, %s183
      %s201 = sphi 0, %s201
      %s203 = sphi 0, %s201
      %s204 = sphi 0, %s203
      %s218 = sphi 0, %s204
      %s222 = sphi 0, %s222
      %s224 = sphi 0, %s222
      %s225 = sphi 0, %s224
      %s239 = sphi 0, %s225
      %s243 = sphi 0, %s243
      %s245 = sphi 0, %s243
      %s246 = sphi 0, %s245
      %s260 = sphi 0, %s246
      %s266 = sphi 0, %s268
      %s269 = sphi 0, %s266
      %s270 = sphi 0, %s269
      %s286 = sphi 0, %s270
    $region4: #{generator2_forward_fm.1} parent=1 // loop_header_branch
      %23 = sbr.rel (%p21) target = $region8
    $region5: #{generator2_forward_fm.1} parent=1 // loop_body
      %s25 = ssub.s32 %s20, 1
      %s26 = ssub.s32 %s20, 2
      %s27 = sadd.s32 %s20, 1
      %s28 = ssub.s32 %s20, %s27
      %p29 = scmp.eq.s32.totalorder %s28, 0
      %s31 = sadd.s32 %s30, 1
      %s32 = scalar_select %p29, %s30, %s31
      %p35 = pneg %p29
      %p36 = scmp.eq.s32.totalorder %s20, 1
      %p37 = por %p35, %p36
      %p38 = scmp.ne.s32.totalorder %s30, %s33
      %p39 = scmp.eq.s32.totalorder %s20, 0
      %p40 = por %p38, %p39
      %p41 = scmp.ne.s32.totalorder %s30, %s33
      %p42 = scmp.eq.s32.totalorder %s25, 1
      %p43 = por %p41, %p42
      %p44 = scmp.ne.s32.totalorder %s33, %s34
      %p45 = scmp.eq.s32.totalorder %s25, 0
      %p46 = por %p44, %p45
      %p47 = scmp.ne.s32.totalorder %s33, %s34
      %p48 = scmp.eq.s32.totalorder %s26, 1
      %p49 = por %p47, %p48
      %p51 = scmp.ne.s32.totalorder %s34, %s50
      %p52 = scmp.eq.s32.totalorder %s26, 0
      %p53 = por %p51, %p52
      %s55 = sadd.s32 %s54, 1
      %p58 = scmp.eq.s32.totalorder %s20, 1
      %p59 = scmp.ne.s32.totalorder %s54, %s56
      %p60 = scmp.eq.s32.totalorder %s20, 0
      %p61 = por %p59, %p60
      %p62 = scmp.ne.s32.totalorder %s54, %s56
      %p63 = scmp.eq.s32.totalorder %s25, 1
      %p64 = por %p62, %p63
      %p65 = scmp.ne.s32.totalorder %s56, %s57
      %p66 = scmp.eq.s32.totalorder %s25, 0
      %p67 = por %p65, %p66
      %p68 = scmp.ne.s32.totalorder %s56, %s57
      %p69 = scmp.eq.s32.totalorder %s26, 1
      %p70 = por %p68, %p69
      %p72 = scmp.ne.s32.totalorder %s57, %s71
      %p73 = scmp.eq.s32.totalorder %s26, 0
      %p74 = por %p72, %p73
      %s76 = sadd.s32 %s75, 1
      %p79 = scmp.eq.s32.totalorder %s20, 1
      %p80 = scmp.ne.s32.totalorder %s75, %s77
      %p81 = scmp.eq.s32.totalorder %s20, 0
      %p82 = por %p80, %p81
      %p83 = scmp.ne.s32.totalorder %s75, %s77
      %p84 = scmp.eq.s32.totalorder %s25, 1
      %p85 = por %p83, %p84
      %p86 = scmp.ne.s32.totalorder %s77, %s78
      %p87 = scmp.eq.s32.totalorder %s25, 0
      %p88 = por %p86, %p87
      %p89 = scmp.ne.s32.totalorder %s77, %s78
      %p90 = scmp.eq.s32.totalorder %s26, 1
      %p91 = por %p89, %p90
      %p93 = scmp.ne.s32.totalorder %s78, %s92
      %p94 = scmp.eq.s32.totalorder %s26, 0
      %p95 = por %p93, %p94
      %s97 = sadd.s32 %s96, 1
      %p100 = scmp.eq.s32.totalorder %s20, 1
      %p101 = scmp.ne.s32.totalorder %s96, %s98
      %p102 = scmp.eq.s32.totalorder %s20, 0
      %p103 = por %p101, %p102
      %p104 = scmp.ne.s32.totalorder %s96, %s98
      %p105 = scmp.eq.s32.totalorder %s25, 1
      %p106 = por %p104, %p105
      %p107 = scmp.ne.s32.totalorder %s98, %s99
      %p108 = scmp.eq.s32.totalorder %s25, 0
      %p109 = por %p107, %p108
      %p110 = scmp.ne.s32.totalorder %s98, %s99
      %p111 = scmp.eq.s32.totalorder %s26, 1
      %p112 = por %p110, %p111
      %p114 = scmp.ne.s32.totalorder %s99, %s113
      %p115 = scmp.eq.s32.totalorder %s26, 0
      %p116 = por %p114, %p115
      %s118 = sadd.s32 %s117, 1
      %p121 = scmp.eq.s32.totalorder %s20, 1
      %p122 = scmp.ne.s32.totalorder %s117, %s119
      %p123 = scmp.eq.s32.totalorder %s20, 0
      %p124 = por %p122, %p123
      %p125 = scmp.ne.s32.totalorder %s117, %s119
      %p126 = scmp.eq.s32.totalorder %s25, 1
      %p127 = por %p125, %p126
      %p128 = scmp.ne.s32.totalorder %s119, %s120
      %p129 = scmp.eq.s32.totalorder %s25, 0
      %p130 = por %p128, %p129
      %p131 = scmp.ne.s32.totalorder %s119, %s120
      %p132 = scmp.eq.s32.totalorder %s26, 1
      %p133 = por %p131, %p132
      %p135 = scmp.ne.s32.totalorder %s120, %s134
      %p136 = scmp.eq.s32.totalorder %s26, 0
      %p137 = por %p135, %p136
      %s139 = sadd.s32 %s138, 1
      %p142 = scmp.eq.s32.totalorder %s20, 1
      %p143 = scmp.ne.s32.totalorder %s138, %s140
      %p144 = scmp.eq.s32.totalorder %s20, 0
      %p145 = por %p143, %p144
      %p146 = scmp.ne.s32.totalorder %s138, %s140
      %p147 = scmp.eq.s32.totalorder %s25, 1
      %p148 = por %p146, %p147
      %p149 = scmp.ne.s32.totalorder %s140, %s141
      %p150 = scmp.eq.s32.totalorder %s25, 0
      %p151 = por %p149, %p150
      %p152 = scmp.ne.s32.totalorder %s140, %s141
      %p153 = scmp.eq.s32.totalorder %s26, 1
      %p154 = por %p152, %p153
      %p156 = scmp.ne.s32.totalorder %s141, %s155
      %p157 = scmp.eq.s32.totalorder %s26, 0
      %p158 = por %p156, %p157
      %s160 = sadd.s32 %s159, 1
      %p163 = scmp.eq.s32.totalorder %s20, 1
      %p164 = scmp.ne.s32.totalorder %s159, %s161
      %p165 = scmp.eq.s32.totalorder %s20, 0
      %p166 = por %p164, %p165
      %p167 = scmp.ne.s32.totalorder %s159, %s161
      %p168 = scmp.eq.s32.totalorder %s25, 1
      %p169 = por %p167, %p168
      %p170 = scmp.ne.s32.totalorder %s161, %s162
      %p171 = scmp.eq.s32.totalorder %s25, 0
      %p172 = por %p170, %p171
      %p173 = scmp.ne.s32.totalorder %s161, %s162
      %p174 = scmp.eq.s32.totalorder %s26, 1
      %p175 = por %p173, %p174
      %p177 = scmp.ne.s32.totalorder %s162, %s176
      %p178 = scmp.eq.s32.totalorder %s26, 0
      %p179 = por %p177, %p178
      %s181 = sadd.s32 %s180, 1
      %p184 = scmp.eq.s32.totalorder %s20, 1
      %p185 = scmp.ne.s32.totalorder %s180, %s182
      %p186 = scmp.eq.s32.totalorder %s20, 0
      %p187 = por %p185, %p186
      %p188 = scmp.ne.s32.totalorder %s180, %s182
      %p189 = scmp.eq.s32.totalorder %s25, 1
      %p190 = por %p188, %p189
      %p191 = scmp.ne.s32.totalorder %s182, %s183
      %p192 = scmp.eq.s32.totalorder %s25, 0
      %p193 = por %p191, %p192
      %p194 = scmp.ne.s32.totalorder %s182, %s183
      %p195 = scmp.eq.s32.totalorder %s26, 1
      %p196 = por %p194, %p195
      %p198 = scmp.ne.s32.totalorder %s183, %s197
      %p199 = scmp.eq.s32.totalorder %s26, 0
      %p200 = por %p198, %p199
      %s202 = sadd.s32 %s201, 1
      %p205 = scmp.eq.s32.totalorder %s20, 1
      %p206 = scmp.ne.s32.totalorder %s201, %s203
      %p207 = scmp.eq.s32.totalorder %s20, 0
      %p208 = por %p206, %p207
      %p209 = scmp.ne.s32.totalorder %s201, %s203
      %p210 = scmp.eq.s32.totalorder %s25, 1
      %p211 = por %p209, %p210
      %p212 = scmp.ne.s32.totalorder %s203, %s204
      %p213 = scmp.eq.s32.totalorder %s25, 0
      %p214 = por %p212, %p213
      %p215 = scmp.ne.s32.totalorder %s203, %s204
      %p216 = scmp.eq.s32.totalorder %s26, 1
      %p217 = por %p215, %p216
      %p219 = scmp.ne.s32.totalorder %s204, %s218
      %p220 = scmp.eq.s32.totalorder %s26, 0
      %p221 = por %p219, %p220
      %s223 = sadd.s32 %s222, 1
      %p226 = scmp.eq.s32.totalorder %s20, 1
      %p227 = scmp.ne.s32.totalorder %s222, %s224
      %p228 = scmp.eq.s32.totalorder %s20, 0
      %p229 = por %p227, %p228
      %p230 = scmp.ne.s32.totalorder %s222, %s224
      %p231 = scmp.eq.s32.totalorder %s25, 1
      %p232 = por %p230, %p231
      %p233 = scmp.ne.s32.totalorder %s224, %s225
      %p234 = scmp.eq.s32.totalorder %s25, 0
      %p235 = por %p233, %p234
      %p236 = scmp.ne.s32.totalorder %s224, %s225
      %p237 = scmp.eq.s32.totalorder %s26, 1
      %p238 = por %p236, %p237
      %p240 = scmp.ne.s32.totalorder %s225, %s239
      %p241 = scmp.eq.s32.totalorder %s26, 0
      %p242 = por %p240, %p241
      %s244 = sadd.s32 %s243, 1
      %p247 = scmp.eq.s32.totalorder %s20, 1
      %p248 = scmp.ne.s32.totalorder %s243, %s245
      %p249 = scmp.eq.s32.totalorder %s20, 0
      %p250 = por %p248, %p249
      %p251 = scmp.ne.s32.totalorder %s243, %s245
      %p252 = scmp.eq.s32.totalorder %s25, 1
      %p253 = por %p251, %p252
      %p254 = scmp.ne.s32.totalorder %s245, %s246
      %p255 = scmp.eq.s32.totalorder %s25, 0
      %p256 = por %p254, %p255
      %p257 = scmp.ne.s32.totalorder %s245, %s246
      %p258 = scmp.eq.s32.totalorder %s26, 1
      %p259 = por %p257, %p258
      %p261 = scmp.ne.s32.totalorder %s246, %s260
      %p262 = scmp.eq.s32.totalorder %s26, 0
      %p263 = por %p261, %p262
      %s264 = ssub.s32 %s20, %s27
      %p265 = scmp.eq.s32.totalorder %s264, 0
      %s267 = sadd.s32 %s266, 1
      %s268 = scalar_select %p265, %s266, %s267
      %p271 = pneg %p265
      %p272 = scmp.eq.s32.totalorder %s20, 1
      %p273 = por %p271, %p272
      %p274 = scmp.ne.s32.totalorder %s266, %s269
      %p275 = scmp.eq.s32.totalorder %s20, 0
      %p276 = por %p274, %p275
      %p277 = scmp.ne.s32.totalorder %s266, %s269
      %p278 = scmp.eq.s32.totalorder %s25, 1
      %p279 = por %p277, %p278
      %p280 = scmp.ne.s32.totalorder %s269, %s270
      %p281 = scmp.eq.s32.totalorder %s25, 0
      %p282 = por %p280, %p281
      %p283 = scmp.ne.s32.totalorder %s269, %s270
      %p284 = scmp.eq.s32.totalorder %s26, 1
      %p285 = por %p283, %p284
      %p287 = scmp.ne.s32.totalorder %s270, %s286
      %p288 = scmp.eq.s32.totalorder %s26, 0
      %p289 = por %p287, %p288
      %p290 = scmp.le.s32.totalorder 1, %s20
      %p291 = scmp.lt.s32.totalorder %s20, 3
      %p292 = pnand %p290, %p291
      %p293 = pneg %p292
      // Predicated region
      $region9: #{generator2_forward_fm.1} parent=5 // pred_check
        _
      $region10: #{generator2_forward_fm.1} parent=5 // pred_check_branch
        %295 = sbr.rel (%p292) target = $region12
      $region11: #{generator2_forward_fm.1} parent=5 // pred_region
        %s296 = ssub.s32 %s20, 1
        // Predicated region
        $region13: #{generator2_forward_fm.1} parent=11 // pred_check
          %p297 = pneg %p67
        $region14: #{generator2_forward_fm.1} parent=11 // pred_check_branch
          %299 = sbr.rel (%p297) target = $region16
        $region15: #{generator2_forward_fm.1} parent=11 // pred_region
          _
        $region16: #{generator2_forward_fm.1} parent=11 // pred_fallthru
          _
        // Predicated region
        $region17: #{generator2_forward_fm.1} parent=11 // pred_check
          %p300 = pneg %p88
        $region18: #{generator2_forward_fm.1} parent=11 // pred_check_branch
          %302 = sbr.rel (%p300) target = $region20
        $region19: #{generator2_forward_fm.1} parent=11 // pred_region
          _
        $region20: #{generator2_forward_fm.1} parent=11 // pred_fallthru
          _
        // Predicated region
        $region21: #{generator2_forward_fm.1} parent=11 // pred_check
          %p303 = pneg %p109
        $region22: #{generator2_forward_fm.1} parent=11 // pred_check_branch
          %305 = sbr.rel (%p303) target = $region24
        $region23: #{generator2_forward_fm.1} parent=11 // pred_region
          _
        $region24: #{generator2_forward_fm.1} parent=11 // pred_fallthru
          _
        // Predicated region
        $region25: #{generator2_forward_fm.1} parent=11 // pred_check
          %p306 = pneg %p130
        $region26: #{generator2_forward_fm.1} parent=11 // pred_check_branch
          %308 = sbr.rel (%p306) target = $region28
        $region27: #{generator2_forward_fm.1} parent=11 // pred_region
          _
        $region28: #{generator2_forward_fm.1} parent=11 // pred_fallthru
          _
        // Predicated region
        $region29: #{generator2_forward_fm.1} parent=11 // pred_check
          %p309 = pneg %p151
        $region30: #{generator2_forward_fm.1} parent=11 // pred_check_branch
          %311 = sbr.rel (%p309) target = $region32
        $region31: #{generator2_forward_fm.1} parent=11 // pred_region
          _
        $region32: #{generator2_forward_fm.1} parent=11 // pred_fallthru
          _
        // Predicated region
        $region33: #{generator2_forward_fm.1} parent=11 // pred_check
          %p312 = pneg %p172
        $region34: #{generator2_forward_fm.1} parent=11 // pred_check_branch
          %314 = sbr.rel (%p312) target = $region36
        $region35: #{generator2_forward_fm.1} parent=11 // pred_region
          _
        $region36: #{generator2_forward_fm.1} parent=11 // pred_fallthru
          _
        // Predicated region
        $region37: #{generator2_forward_fm.1} parent=11 // pred_check
          %p315 = pneg %p193
        $region38: #{generator2_forward_fm.1} parent=11 // pred_check_branch
          %317 = sbr.rel (%p315) target = $region40
        $region39: #{generator2_forward_fm.1} parent=11 // pred_region
          _
        $region40: #{generator2_forward_fm.1} parent=11 // pred_fallthru
          _
        // Predicated region
        $region41: #{generator2_forward_fm.1} parent=11 // pred_check
          %p318 = pneg %p214
        $region42: #{generator2_forward_fm.1} parent=11 // pred_check_branch
          %320 = sbr.rel (%p318) target = $region44
        $region43: #{generator2_forward_fm.1} parent=11 // pred_region
          _
        $region44: #{generator2_forward_fm.1} parent=11 // pred_fallthru
          _
        // Predicated region
        $region45: #{generator2_forward_fm.1} parent=11 // pred_check
          %p321 = pneg %p235
        $region46: #{generator2_forward_fm.1} parent=11 // pred_check_branch
          %323 = sbr.rel (%p321) target = $region48
        $region47: #{generator2_forward_fm.1} parent=11 // pred_region
          _
        $region48: #{generator2_forward_fm.1} parent=11 // pred_fallthru
          _
        // Predicated region
        $region49: #{generator2_forward_fm.1} parent=11 // pred_check
          %p324 = pneg %p256
        $region50: #{generator2_forward_fm.1} parent=11 // pred_check_branch
          %326 = sbr.rel (%p324) target = $region52
        $region51: #{generator2_forward_fm.1} parent=11 // pred_region
          _
        $region52: #{generator2_forward_fm.1} parent=11 // pred_fallthru
          _
      $region12: #{generator2_forward_fm.1} parent=5 // pred_fallthru
        _
      %p327 = scmp.lt.s32.totalorder %s20, 2
      // Predicated region
      $region53: #{generator2_forward_fm.1} parent=5 // pred_check
        %p328 = pneg %p327
      $region54: #{generator2_forward_fm.1} parent=5 // pred_check_branch
        %330 = sbr.rel (%p328) target = $region56
      $region55: #{generator2_forward_fm.1} parent=5 // pred_region
        // Predicated region
        $region57: #{generator2_forward_fm.1} parent=55 // pred_check
          %p331 = pneg %p40
        $region58: #{generator2_forward_fm.1} parent=55 // pred_check_branch
          %333 = sbr.rel (%p331) target = $region60
        $region59: #{generator2_forward_fm.1} parent=55 // pred_region
          %s334 = smul.u32 4, %s20
          %p335 = scmp.lt.s32.totalorder %s334, 7
          %s336 = scalar_select %p335, %s334, 7
          %s337 = smul.addr %s336, 2
          %s338 = scalar_lea.vmem %s0, %s337
          %s339 = smul.u32 4, %s20
        $region60: #{generator2_forward_fm.1} parent=55 // pred_fallthru
          _
      $region56: #{generator2_forward_fm.1} parent=5 // pred_fallthru
        _
      %p340 = scmp.le.s32.totalorder 1, %s20
      %p341 = scmp.lt.s32.totalorder %s20, 3
      %p342 = pnand %p340, %p341
      %p343 = pneg %p342
      // Predicated region
      $region61: #{generator2_forward_fm.1} parent=5 // pred_check
        _
      $region62: #{generator2_forward_fm.1} parent=5 // pred_check_branch
        %345 = sbr.rel (%p342) target = $region64
      $region63: #{generator2_forward_fm.1} parent=5 // pred_region
        %s346 = ssub.s32 %s20, 1
        %s347 = smul.u32 4, %s25
        %p348 = scmp.lt.s32.totalorder %s347, 7
        %s349 = scalar_select %p348, %s347, 7
        %s350 = smul.addr %s349, 2
        %s351 = scalar_lea.vmem %s0, %s350
        %p352 = pneg %p46
        %p353 = pneg %p43
        %p354 = pneg %p67
        %p355 = pneg %p64
        %p356 = pneg %p88
        %p357 = pneg %p85
        %p358 = pneg %p109
        %p359 = pneg %p106
        %p360 = pneg %p130
        %p361 = pneg %p127
        %p362 = pneg %p151
        %p363 = pneg %p148
        %p364 = pneg %p172
        %p365 = pneg %p169
        %p366 = pneg %p193
        %p367 = pneg %p190
        %p368 = pneg %p214
        %p369 = pneg %p211
        %p370 = pneg %p235
        %p371 = pneg %p232
        %p372 = pneg %p256
        %p373 = pneg %p253
        %p374 = pneg %p282
        %p375 = pneg %p279
        %s376 = sand.u32 %s269, 1
        %s377 = scalar_lea.sflag [#allocation3], %s376
        %s378 = sand.u32 %s269, 1
        %s379 = smul.addr %s378, 8
        %s380 = scalar_lea.vmem [#allocation2], %s379
        %s381 = smul.u32 4, %s25
        %p382 = scmp.lt.s32.totalorder %s381, 7
        %s383 = scalar_select %p382, %s381, 7
        %s384 = smul.addr %s383, 2
        %s385 = scalar_lea.vmem %s0, %s384
        %s386 = smul.u32 4, %s25
        %s387 = smul.u32 4, %s25
        %v389 = vld [vmem:[%s1] sm:$0xff]
        %v390 = vld [vmem:[%s1 + $0x8] sm:$0xff]
        %v391 = vld [vmem:[%s1 + $0x10] sm:$0xff]
        %v392 = vld [vmem:[%s1 + $0x18] sm:$0xff]
        %v393 = vld [vmem:[%s2] sm:$0xff]
        %v394 = vld [vmem:[%s2 + $0x8] sm:$0xff]
        %v395 = vld [vmem:[%s2 + $0x10] sm:$0xff]
        %v396 = vld [vmem:[%s2 + $0x18] sm:$0xff]
        %v397 = vld [vmem:[%s9] sm:$0xf]
        %v398 = vld [vmem:[%s10] sm:$0x3]
        %v399 = vld [vmem:[%s3] sm:$0xf]
        %v400 = vld [vmem:[%s3 + $0x4] sm:$0xf]
        %v401 = vld [vmem:[%s3 + $0x8] sm:$0xf]
        %v402 = vld [vmem:[%s3 + $0xc] sm:$0xf]
        %v403 = vld [vmem:[%s4] sm:$0xff]
        %v404 = vld [vmem:[%s4 + $0x8] sm:$0xff]
        %v405 = vld [vmem:[%s4 + $0x10] sm:$0xff]
        %v406 = vld [vmem:[%s4 + $0x18] sm:$0xff]
        %v407 = vpack.c.bf16 %v403, %v403
        %v408 = vpack.c.bf16 %v404, %v404
        %v409 = vpack.c.bf16 %v405, %v405
        %v410 = vpack.c.bf16 %v406, %v406
        %v411 = vld [vmem:[%s5] sm:$0xf]
        %v412 = vld [vmem:[%s5 + $0x4] sm:$0xf]
        %v413 = vld [vmem:[%s5 + $0x8] sm:$0xf]
        %v414 = vld [vmem:[%s5 + $0xc] sm:$0xf]
        %v415 = vld [vmem:[%s6] sm:$0xff]
        %v416 = vld [vmem:[%s6 + $0x8] sm:$0xff]
        %v417 = vld [vmem:[%s6 + $0x10] sm:$0xff]
        %v418 = vld [vmem:[%s6 + $0x18] sm:$0xff]
        %v419 = vpack.c.bf16 %v415, %v415
        %v420 = vpack.c.bf16 %v416, %v416
        %v421 = vpack.c.bf16 %v417, %v417
        %v422 = vpack.c.bf16 %v418, %v418
        %v423 = vld [vmem:[%s7] sm:$0xf]
        %v424 = vld [vmem:[%s7 + $0x4] sm:$0xf]
        %v425 = vld [vmem:[%s7 + $0x8] sm:$0xf]
        %v426 = vld [vmem:[%s7 + $0xc] sm:$0xf]
        %v427 = vld [vmem:[%s8] sm:$0xff]
        %v428 = vld [vmem:[%s8 + $0x8] sm:$0xff]
        %v429 = vld [vmem:[%s8 + $0x10] sm:$0xff]
        %v430 = vld [vmem:[%s8 + $0x18] sm:$0xff]
        %v431 = vpack.c.bf16 %v427, %v427
        %v432 = vpack.c.bf16 %v428, %v428
        %v433 = vpack.c.bf16 %v429, %v429
        %v434 = vpack.c.bf16 %v430, %v430
        %v435 = vld [vmem:[%s385] sm:$0x3]
        %437 = vset.pattern.permute.xlu0 0
        %438 = vperm.xlu0 %437, %v389
        %v439 = vpop.permute.xlu0 %438
        %442 = vset.pattern.permute.xlu0 0
        %443 = vperm.xlu0 %442, %v390
        %v444 = vpop.permute.xlu0 %443
        %447 = vset.pattern.permute.xlu0 0
        %448 = vperm.xlu0 %447, %v391
        %v449 = vpop.permute.xlu0 %448
        %452 = vset.pattern.permute.xlu0 0
        %453 = vperm.xlu0 %452, %v392
        %v454 = vpop.permute.xlu0 %453
        %v456 = vperm.slane %v435, 0
        %v457 = vmul.f32 %v439, %v456
        %v458 = vmul.f32 %v444, %v456
        %v459 = vmul.f32 %v449, %v456
        %v460 = vmul.f32 %v454, %v456
        %461 = vset.pattern.permute.xlu0 1
        %462 = vperm.xlu0 %461, %v389
        %v463 = vpop.permute.xlu0 %462
        %465 = vset.pattern.permute.xlu0 1
        %466 = vperm.xlu0 %465, %v390
        %v467 = vpop.permute.xlu0 %466
        %469 = vset.pattern.permute.xlu0 1
        %470 = vperm.xlu0 %469, %v391
        %v471 = vpop.permute.xlu0 %470
        %473 = vset.pattern.permute.xlu0 1
        %474 = vperm.xlu0 %473, %v392
        %v475 = vpop.permute.xlu0 %474
        %v477 = vperm.slane %v435, 1
        %v478 = vmul.f32 %v463, %v477
        %v479 = vmul.f32 %v467, %v477
        %v480 = vmul.f32 %v471, %v477
        %v481 = vmul.f32 %v475, %v477
        %v482 = vadd.f32 %v457, %v478
        %v483 = vadd.f32 %v458, %v479
        %v484 = vadd.f32 %v459, %v480
        %v485 = vadd.f32 %v460, %v481
        %487 = vset.pattern.permute.xlu0 0
        %488 = vperm.xlu0 %487, %v393
        %v489 = vpop.permute.xlu0 %488
        %492 = vset.pattern.permute.xlu0 0
        %493 = vperm.xlu0 %492, %v394
        %v494 = vpop.permute.xlu0 %493
        %497 = vset.pattern.permute.xlu0 0
        %498 = vperm.xlu0 %497, %v395
        %v499 = vpop.permute.xlu0 %498
        %502 = vset.pattern.permute.xlu0 0
        %503 = vperm.xlu0 %502, %v396
        %v504 = vpop.permute.xlu0 %503
        %v506 = vadd.f32 %v482, %v489
        %v507 = vadd.f32 %v483, %v494
        %v508 = vadd.f32 %v484, %v499
        %v509 = vadd.f32 %v485, %v504
        %v510 = vmax.f32 %v506, 0.0
        %v511 = vmax.f32 %v507, 0.0
        %v512 = vmax.f32 %v508, 0.0
        %v513 = vmax.f32 %v509, 0.0
        %v514 = vpack.c.bf16 %v511, %v510
        %v515 = vpack.c.bf16 %v513, %v512
        %v520 = vunpack.c.l.b16 %v399
        %v521 = vunpack.c.l.b16 %v400
        %v522 = vunpack.c.l.b16 %v401
        %v523 = vunpack.c.l.b16 %v402
        %v524 = vpack.c.b16 %v521, %v520
        %v525 = vpack.c.b16 %v523, %v522
        %vm526 = vcmask 261120
        %v528 = vsel %vm526, %v524, 0
        %v531 = vsel %vm526, %v525, 0
        %533 = vmatpush.bf16.msra.mxu0 0
        %534 = vmatpush.bf16.msra.mxu0 0
        %535 = vmatpush.bf16.msra.mxu0 0
        %536 = vmatpush.bf16.msra.mxu0 0
        %537 = vmatpush.bf16.msra.mxu0 0
        %538 = vmatpush.bf16.msra.mxu0 0
        %539 = vmatpush.bf16.msra.mxu0 %v515
        %540 = vmatpush.bf16.msra.mxu0 %v514
        %541 = vmatmul.bf16.gmra.mxu0 %v528
        %v542 = vpop.f32.mrf.mxu0
        %v543 = vadd.f32 0.0, %v542
        %v544 = vpop.f32.mrf.mxu0
        %v545 = vadd.f32 0.0, %v544
        %546 = vmatmul.bf16.gmra.mxu0 %v531
        %v547 = vpop.f32.mrf.mxu0
        %v548 = vadd.f32 0.0, %v547
        %v549 = vpop.f32.mrf.mxu0
        %v550 = vadd.f32 0.0, %v549
        %551 = vdwg.mxu0
        %v552 = vpack.c.bf16 %v543, %v543
        %v553 = vpack.c.bf16 %v545, %v545
        %v554 = vpack.c.bf16 %v548, %v548
        %v555 = vpack.c.bf16 %v550, %v550
        %557 = vset.pattern.permute.xlu0 0
        %558 = vperm.xlu0 %557, %v407
        %v559 = vpop.permute.xlu0 %558
        %v562 = vunpack.c.l.s4 839922192
        %v563 = vunpack.c.0.s8 %v562
        %v564 = vperm.slane %v559, %v563
        %566 = vset.pattern.permute.xlu0 0
        %567 = vperm.xlu0 %566, %v408
        %v568 = vpop.permute.xlu0 %567
        %v571 = vunpack.c.l.s4 839922192
        %v572 = vunpack.c.0.s8 %v571
        %v573 = vperm.slane %v568, %v572
        %575 = vset.pattern.permute.xlu0 0
        %576 = vperm.xlu0 %575, %v409
        %v577 = vpop.permute.xlu0 %576
        %v580 = vunpack.c.l.s4 839922192
        %v581 = vunpack.c.0.s8 %v580
        %v582 = vperm.slane %v577, %v581
        %584 = vset.pattern.permute.xlu0 0
        %585 = vperm.xlu0 %584, %v410
        %v586 = vpop.permute.xlu0 %585
        %v589 = vunpack.c.l.s4 839922192
        %v590 = vunpack.c.0.s8 %v589
        %v591 = vperm.slane %v586, %v590
        %v592 = vunpack.c.l.bf16 %v552
        %v593 = vunpack.c.l.bf16 %v553
        %v594 = vunpack.c.l.bf16 %v554
        %v595 = vunpack.c.l.bf16 %v555
        %v596 = vunpack.c.l.bf16 %v564
        %v597 = vunpack.c.l.bf16 %v573
        %v598 = vunpack.c.l.bf16 %v582
        %v599 = vunpack.c.l.bf16 %v591
        %v600 = vadd.f32 %v592, %v596
        %v601 = vadd.f32 %v593, %v597
        %v602 = vadd.f32 %v594, %v598
        %v603 = vadd.f32 %v595, %v599
        %v604 = vpack.c.bf16 %v600, %v600
        %v605 = vpack.c.bf16 %v601, %v601
        %v606 = vpack.c.bf16 %v602, %v602
        %v607 = vpack.c.bf16 %v603, %v603
        %v608 = vunpack.c.l.bf16 %v604
        %v609 = vunpack.c.l.bf16 %v605
        %v610 = vunpack.c.l.bf16 %v606
        %v611 = vunpack.c.l.bf16 %v607
        %v612 = vmax.f32 %v608, 0.0
        %v613 = vmax.f32 %v609, 0.0
        %v614 = vmax.f32 %v610, 0.0
        %v615 = vmax.f32 %v611, 0.0
        %v616 = vpack.c.bf16 %v613, %v612
        %v617 = vpack.c.bf16 %v615, %v614
        %v622 = vunpack.c.l.b16 %v411
        %v623 = vunpack.c.l.b16 %v412
        %v624 = vunpack.c.l.b16 %v413
        %v625 = vunpack.c.l.b16 %v414
        %v626 = vpack.c.b16 %v623, %v622
        %v627 = vpack.c.b16 %v625, %v624
        %v629 = vsel %vm526, %v626, 0
        %v632 = vsel %vm526, %v627, 0
        %634 = vmatpush.bf16.msra.mxu0 0
        %635 = vmatpush.bf16.msra.mxu0 0
        %636 = vmatpush.bf16.msra.mxu0 0
        %637 = vmatpush.bf16.msra.mxu0 0
        %638 = vmatpush.bf16.msra.mxu0 0
        %639 = vmatpush.bf16.msra.mxu0 0
        %640 = vmatpush.bf16.msra.mxu0 %v617
        %641 = vmatpush.bf16.msra.mxu0 %v616
        %642 = vmatmul.bf16.gmra.mxu0 %v629
        %v643 = vpop.f32.mrf.mxu0
        %v644 = vadd.f32 0.0, %v643
        %v645 = vpop.f32.mrf.mxu0
        %v646 = vadd.f32 0.0, %v645
        %647 = vmatmul.bf16.gmra.mxu0 %v632
        %v648 = vpop.f32.mrf.mxu0
        %v649 = vadd.f32 0.0, %v648
        %v650 = vpop.f32.mrf.mxu0
        %v651 = vadd.f32 0.0, %v650
        %652 = vdwg.mxu0
        %v653 = vpack.c.bf16 %v644, %v644
        %v654 = vpack.c.bf16 %v646, %v646
        %v655 = vpack.c.bf16 %v649, %v649
        %v656 = vpack.c.bf16 %v651, %v651
        %658 = vset.pattern.permute.xlu0 0
        %659 = vperm.xlu0 %658, %v419
        %v660 = vpop.permute.xlu0 %659
        %v663 = vunpack.c.l.s4 839922192
        %v664 = vunpack.c.0.s8 %v663
        %v665 = vperm.slane %v660, %v664
        %667 = vset.pattern.permute.xlu0 0
        %668 = vperm.xlu0 %667, %v420
        %v669 = vpop.permute.xlu0 %668
        %v672 = vunpack.c.l.s4 839922192
        %v673 = vunpack.c.0.s8 %v672
        %v674 = vperm.slane %v669, %v673
        %676 = vset.pattern.permute.xlu0 0
        %677 = vperm.xlu0 %676, %v421
        %v678 = vpop.permute.xlu0 %677
        %v681 = vunpack.c.l.s4 839922192
        %v682 = vunpack.c.0.s8 %v681
        %v683 = vperm.slane %v678, %v682
        %685 = vset.pattern.permute.xlu0 0
        %686 = vperm.xlu0 %685, %v422
        %v687 = vpop.permute.xlu0 %686
        %v690 = vunpack.c.l.s4 839922192
        %v691 = vunpack.c.0.s8 %v690
        %v692 = vperm.slane %v687, %v691
        %v693 = vunpack.c.l.bf16 %v653
        %v694 = vunpack.c.l.bf16 %v654
        %v695 = vunpack.c.l.bf16 %v655
        %v696 = vunpack.c.l.bf16 %v656
        %v697 = vunpack.c.l.bf16 %v665
        %v698 = vunpack.c.l.bf16 %v674
        %v699 = vunpack.c.l.bf16 %v683
        %v700 = vunpack.c.l.bf16 %v692
        %v701 = vadd.f32 %v693, %v697
        %v702 = vadd.f32 %v694, %v698
        %v703 = vadd.f32 %v695, %v699
        %v704 = vadd.f32 %v696, %v700
        %v705 = vpack.c.bf16 %v701, %v701
        %v706 = vpack.c.bf16 %v702, %v702
        %v707 = vpack.c.bf16 %v703, %v703
        %v708 = vpack.c.bf16 %v704, %v704
        %v709 = vunpack.c.l.bf16 %v705
        %v710 = vunpack.c.l.bf16 %v706
        %v711 = vunpack.c.l.bf16 %v707
        %v712 = vunpack.c.l.bf16 %v708
        %v713 = vmax.f32 %v709, 0.0
        %v714 = vmax.f32 %v710, 0.0
        %v715 = vmax.f32 %v711, 0.0
        %v716 = vmax.f32 %v712, 0.0
        %v717 = vpack.c.bf16 %v714, %v713
        %v718 = vpack.c.bf16 %v716, %v715
        %v723 = vunpack.c.l.b16 %v423
        %v724 = vunpack.c.l.b16 %v424
        %v725 = vunpack.c.l.b16 %v425
        %v726 = vunpack.c.l.b16 %v426
        %v727 = vpack.c.b16 %v724, %v723
        %v728 = vpack.c.b16 %v726, %v725
        %v730 = vsel %vm526, %v727, 0
        %v733 = vsel %vm526, %v728, 0
        %735 = vmatpush.bf16.msra.mxu0 0
        %736 = vmatpush.bf16.msra.mxu0 0
        %737 = vmatpush.bf16.msra.mxu0 0
        %738 = vmatpush.bf16.msra.mxu0 0
        %739 = vmatpush.bf16.msra.mxu0 0
        %740 = vmatpush.bf16.msra.mxu0 0
        %741 = vmatpush.bf16.msra.mxu0 %v718
        %742 = vmatpush.bf16.msra.mxu0 %v717
        %743 = vmatmul.bf16.gmra.mxu0 %v730
        %v744 = vpop.f32.mrf.mxu0
        %v745 = vadd.f32 0.0, %v744
        %v746 = vpop.f32.mrf.mxu0
        %v747 = vadd.f32 0.0, %v746
        %748 = vmatmul.bf16.gmra.mxu0 %v733
        %v749 = vpop.f32.mrf.mxu0
        %v750 = vadd.f32 0.0, %v749
        %v751 = vpop.f32.mrf.mxu0
        %v752 = vadd.f32 0.0, %v751
        %753 = vdwg.mxu0
        %v754 = vpack.c.bf16 %v745, %v745
        %v755 = vpack.c.bf16 %v747, %v747
        %v756 = vpack.c.bf16 %v750, %v750
        %v757 = vpack.c.bf16 %v752, %v752
        %759 = vset.pattern.permute.xlu0 0
        %760 = vperm.xlu0 %759, %v431
        %v761 = vpop.permute.xlu0 %760
        %v764 = vunpack.c.l.s4 839922192
        %v765 = vunpack.c.0.s8 %v764
        %v766 = vperm.slane %v761, %v765
        %768 = vset.pattern.permute.xlu0 0
        %769 = vperm.xlu0 %768, %v432
        %v770 = vpop.permute.xlu0 %769
        %v773 = vunpack.c.l.s4 839922192
        %v774 = vunpack.c.0.s8 %v773
        %v775 = vperm.slane %v770, %v774
        %777 = vset.pattern.permute.xlu0 0
        %778 = vperm.xlu0 %777, %v433
        %v779 = vpop.permute.xlu0 %778
        %v782 = vunpack.c.l.s4 839922192
        %v783 = vunpack.c.0.s8 %v782
        %v784 = vperm.slane %v779, %v783
        %786 = vset.pattern.permute.xlu0 0
        %787 = vperm.xlu0 %786, %v434
        %v788 = vpop.permute.xlu0 %787
        %v791 = vunpack.c.l.s4 839922192
        %v792 = vunpack.c.0.s8 %v791
        %v793 = vperm.slane %v788, %v792
        %v794 = vunpack.c.l.bf16 %v754
        %v795 = vunpack.c.l.bf16 %v755
        %v796 = vunpack.c.l.bf16 %v756
        %v797 = vunpack.c.l.bf16 %v757
        %v798 = vunpack.c.l.bf16 %v766
        %v799 = vunpack.c.l.bf16 %v775
        %v800 = vunpack.c.l.bf16 %v784
        %v801 = vunpack.c.l.bf16 %v793
        %v802 = vadd.f32 %v794, %v798
        %v803 = vadd.f32 %v795, %v799
        %v804 = vadd.f32 %v796, %v800
        %v805 = vadd.f32 %v797, %v801
        %v806 = vpack.c.bf16 %v802, %v802
        %v807 = vpack.c.bf16 %v803, %v803
        %v808 = vpack.c.bf16 %v804, %v804
        %v809 = vpack.c.bf16 %v805, %v805
        %v810 = vunpack.c.l.bf16 %v806
        %v811 = vunpack.c.l.bf16 %v807
        %v812 = vunpack.c.l.bf16 %v808
        %v813 = vunpack.c.l.bf16 %v809
        %v814 = vmax.f32 %v810, 0.0
        %v815 = vmax.f32 %v811, 0.0
        %v816 = vmax.f32 %v812, 0.0
        %v817 = vmax.f32 %v813, 0.0
        %v818 = vpack.c.bf16 %v815, %v814
        %v819 = vpack.c.bf16 %v817, %v816
        %v821 = vsel %vm526, %v397, 0
        %823 = vmatpush.bf16.msra.mxu0 0
        %824 = vmatpush.bf16.msra.mxu0 0
        %825 = vmatpush.bf16.msra.mxu0 0
        %826 = vmatpush.bf16.msra.mxu0 0
        %827 = vmatpush.bf16.msra.mxu0 0
        %828 = vmatpush.bf16.msra.mxu0 0
        %829 = vmatpush.bf16.msra.mxu0 %v819
        %830 = vmatpush.bf16.msra.mxu0 %v818
        %831 = vmatmul.bf16.gmra.mxu0 %v821
        %v832 = vpop.f32.mrf.mxu0
        %v833 = vadd.f32 0.0, %v832
        %v834 = vpop.f32.mrf.mxu0
        %835 = vdwg.mxu0
        %837 = vset.pattern.permute.xlu0 0
        %838 = vperm.xlu0 %837, %v398
        %v839 = vpop.permute.xlu0 %838
        %v841 = vadd.f32 %v833, %v839
        %842 = vst [vmem:[%s380] sm:$0x3] %v841
        %v843 = vld [vmem:[%s385 + $0x2] sm:$0x3]
        %v844 = vperm.slane %v843, 0
        %v845 = vmul.f32 %v439, %v844
        %v846 = vmul.f32 %v444, %v844
        %v847 = vmul.f32 %v449, %v844
        %v848 = vmul.f32 %v454, %v844
        %v849 = vperm.slane %v843, 1
        %v850 = vmul.f32 %v463, %v849
        %v851 = vmul.f32 %v467, %v849
        %v852 = vmul.f32 %v471, %v849
        %v853 = vmul.f32 %v475, %v849
        %v854 = vadd.f32 %v845, %v850
        %v855 = vadd.f32 %v846, %v851
        %v856 = vadd.f32 %v847, %v852
        %v857 = vadd.f32 %v848, %v853
        %v858 = vadd.f32 %v854, %v489
        %v859 = vadd.f32 %v855, %v494
        %v860 = vadd.f32 %v856, %v499
        %v861 = vadd.f32 %v857, %v504
        %v862 = vmax.f32 %v858, 0.0
        %v863 = vmax.f32 %v859, 0.0
        %v864 = vmax.f32 %v860, 0.0
        %v865 = vmax.f32 %v861, 0.0
        %v866 = vpack.c.bf16 %v863, %v862
        %v867 = vpack.c.bf16 %v865, %v864
        %868 = vmatpush.bf16.msra.mxu0 0
        %869 = vmatpush.bf16.msra.mxu0 0
        %870 = vmatpush.bf16.msra.mxu0 0
        %871 = vmatpush.bf16.msra.mxu0 0
        %872 = vmatpush.bf16.msra.mxu0 0
        %873 = vmatpush.bf16.msra.mxu0 0
        %874 = vmatpush.bf16.msra.mxu0 %v867
        %875 = vmatpush.bf16.msra.mxu0 %v866
        %876 = vmatmul.bf16.gmra.mxu0 %v528
        %v877 = vpop.f32.mrf.mxu0
        %v878 = vadd.f32 0.0, %v877
        %v879 = vpop.f32.mrf.mxu0
        %v880 = vadd.f32 0.0, %v879
        %881 = vmatmul.bf16.gmra.mxu0 %v531
        %v882 = vpop.f32.mrf.mxu0
        %v883 = vadd.f32 0.0, %v882
        %v884 = vpop.f32.mrf.mxu0
        %v885 = vadd.f32 0.0, %v884
        %886 = vdwg.mxu0
        %v887 = vpack.c.bf16 %v878, %v878
        %v888 = vpack.c.bf16 %v880, %v880
        %v889 = vpack.c.bf16 %v883, %v883
        %v890 = vpack.c.bf16 %v885, %v885
        %v891 = vunpack.c.l.bf16 %v887
        %v892 = vunpack.c.l.bf16 %v888
        %v893 = vunpack.c.l.bf16 %v889
        %v894 = vunpack.c.l.bf16 %v890
        %v895 = vadd.f32 %v891, %v596
        %v896 = vadd.f32 %v892, %v597
        %v897 = vadd.f32 %v893, %v598
        %v898 = vadd.f32 %v894, %v599
        %v899 = vpack.c.bf16 %v895, %v895
        %v900 = vpack.c.bf16 %v896, %v896
        %v901 = vpack.c.bf16 %v897, %v897
        %v902 = vpack.c.bf16 %v898, %v898
        %v903 = vunpack.c.l.bf16 %v899
        %v904 = vunpack.c.l.bf16 %v900
        %v905 = vunpack.c.l.bf16 %v901
        %v906 = vunpack.c.l.bf16 %v902
        %v907 = vmax.f32 %v903, 0.0
        %v908 = vmax.f32 %v904, 0.0
        %v909 = vmax.f32 %v905, 0.0
        %v910 = vmax.f32 %v906, 0.0
        %v911 = vpack.c.bf16 %v908, %v907
        %v912 = vpack.c.bf16 %v910, %v909
        %913 = vmatpush.bf16.msra.mxu0 0
        %914 = vmatpush.bf16.msra.mxu0 0
        %915 = vmatpush.bf16.msra.mxu0 0
        %916 = vmatpush.bf16.msra.mxu0 0
        %917 = vmatpush.bf16.msra.mxu0 0
        %918 = vmatpush.bf16.msra.mxu0 0
        %919 = vmatpush.bf16.msra.mxu0 %v912
        %920 = vmatpush.bf16.msra.mxu0 %v911
        %921 = vmatmul.bf16.gmra.mxu0 %v629
        %v922 = vpop.f32.mrf.mxu0
        %v923 = vadd.f32 0.0, %v922
        %v924 = vpop.f32.mrf.mxu0
        %v925 = vadd.f32 0.0, %v924
        %926 = vmatmul.bf16.gmra.mxu0 %v632
        %v927 = vpop.f32.mrf.mxu0
        %v928 = vadd.f32 0.0, %v927
        %v929 = vpop.f32.mrf.mxu0
        %v930 = vadd.f32 0.0, %v929
        %931 = vdwg.mxu0
        %v932 = vpack.c.bf16 %v923, %v923
        %v933 = vpack.c.bf16 %v925, %v925
        %v934 = vpack.c.bf16 %v928, %v928
        %v935 = vpack.c.bf16 %v930, %v930
        %v936 = vunpack.c.l.bf16 %v932
        %v937 = vunpack.c.l.bf16 %v933
        %v938 = vunpack.c.l.bf16 %v934
        %v939 = vunpack.c.l.bf16 %v935
        %v940 = vadd.f32 %v936, %v697
        %v941 = vadd.f32 %v937, %v698
        %v942 = vadd.f32 %v938, %v699
        %v943 = vadd.f32 %v939, %v700
        %v944 = vpack.c.bf16 %v940, %v940
        %v945 = vpack.c.bf16 %v941, %v941
        %v946 = vpack.c.bf16 %v942, %v942
        %v947 = vpack.c.bf16 %v943, %v943
        %v948 = vunpack.c.l.bf16 %v944
        %v949 = vunpack.c.l.bf16 %v945
        %v950 = vunpack.c.l.bf16 %v946
        %v951 = vunpack.c.l.bf16 %v947
        %v952 = vmax.f32 %v948, 0.0
        %v953 = vmax.f32 %v949, 0.0
        %v954 = vmax.f32 %v950, 0.0
        %v955 = vmax.f32 %v951, 0.0
        %v956 = vpack.c.bf16 %v953, %v952
        %v957 = vpack.c.bf16 %v955, %v954
        %958 = vmatpush.bf16.msra.mxu0 0
        %959 = vmatpush.bf16.msra.mxu0 0
        %960 = vmatpush.bf16.msra.mxu0 0
        %961 = vmatpush.bf16.msra.mxu0 0
        %962 = vmatpush.bf16.msra.mxu0 0
        %963 = vmatpush.bf16.msra.mxu0 0
        %964 = vmatpush.bf16.msra.mxu0 %v957
        %965 = vmatpush.bf16.msra.mxu0 %v956
        %966 = vmatmul.bf16.gmra.mxu0 %v730
        %v967 = vpop.f32.mrf.mxu0
        %v968 = vadd.f32 0.0, %v967
        %v969 = vpop.f32.mrf.mxu0
        %v970 = vadd.f32 0.0, %v969
        %971 = vmatmul.bf16.gmra.mxu0 %v733
        %v972 = vpop.f32.mrf.mxu0
        %v973 = vadd.f32 0.0, %v972
        %v974 = vpop.f32.mrf.mxu0
        %v975 = vadd.f32 0.0, %v974
        %976 = vdwg.mxu0
        %v977 = vpack.c.bf16 %v968, %v968
        %v978 = vpack.c.bf16 %v970, %v970
        %v979 = vpack.c.bf16 %v973, %v973
        %v980 = vpack.c.bf16 %v975, %v975
        %v981 = vunpack.c.l.bf16 %v977
        %v982 = vunpack.c.l.bf16 %v978
        %v983 = vunpack.c.l.bf16 %v979
        %v984 = vunpack.c.l.bf16 %v980
        %v985 = vadd.f32 %v981, %v798
        %v986 = vadd.f32 %v982, %v799
        %v987 = vadd.f32 %v983, %v800
        %v988 = vadd.f32 %v984, %v801
        %v989 = vpack.c.bf16 %v985, %v985
        %v990 = vpack.c.bf16 %v986, %v986
        %v991 = vpack.c.bf16 %v987, %v987
        %v992 = vpack.c.bf16 %v988, %v988
        %v993 = vunpack.c.l.bf16 %v989
        %v994 = vunpack.c.l.bf16 %v990
        %v995 = vunpack.c.l.bf16 %v991
        %v996 = vunpack.c.l.bf16 %v992
        %v997 = vmax.f32 %v993, 0.0
        %v998 = vmax.f32 %v994, 0.0
        %v999 = vmax.f32 %v995, 0.0
        %v1000 = vmax.f32 %v996, 0.0
        %v1001 = vpack.c.bf16 %v998, %v997
        %v1002 = vpack.c.bf16 %v1000, %v999
        %1003 = vmatpush.bf16.msra.mxu0 0
        %1004 = vmatpush.bf16.msra.mxu0 0
        %1005 = vmatpush.bf16.msra.mxu0 0
        %1006 = vmatpush.bf16.msra.mxu0 0
        %1007 = vmatpush.bf16.msra.mxu0 0
        %1008 = vmatpush.bf16.msra.mxu0 0
        %1009 = vmatpush.bf16.msra.mxu0 %v1002
        %1010 = vmatpush.bf16.msra.mxu0 %v1001
        %1011 = vmatmul.bf16.gmra.mxu0 %v821
        %v1012 = vpop.f32.mrf.mxu0
        %v1013 = vadd.f32 0.0, %v1012
        %v1014 = vpop.f32.mrf.mxu0
        %1015 = vdwg.mxu0
        %v1016 = vadd.f32 %v1013, %v839
        %1017 = vst [vmem:[%s380 + $0x2] sm:$0x3] %v1016
        %v1018 = vld [vmem:[%s385 + $0x4] sm:$0x3]
        %v1019 = vperm.slane %v1018, 0
        %v1020 = vmul.f32 %v439, %v1019
        %v1021 = vmul.f32 %v444, %v1019
        %v1022 = vmul.f32 %v449, %v1019
        %v1023 = vmul.f32 %v454, %v1019
        %v1024 = vperm.slane %v1018, 1
        %v1025 = vmul.f32 %v463, %v1024
        %v1026 = vmul.f32 %v467, %v1024
        %v1027 = vmul.f32 %v471, %v1024
        %v1028 = vmul.f32 %v475, %v1024
        %v1029 = vadd.f32 %v1020, %v1025
        %v1030 = vadd.f32 %v1021, %v1026
        %v1031 = vadd.f32 %v1022, %v1027
        %v1032 = vadd.f32 %v1023, %v1028
        %v1033 = vadd.f32 %v1029, %v489
        %v1034 = vadd.f32 %v1030, %v494
        %v1035 = vadd.f32 %v1031, %v499
        %v1036 = vadd.f32 %v1032, %v504
        %v1037 = vmax.f32 %v1033, 0.0
        %v1038 = vmax.f32 %v1034, 0.0
        %v1039 = vmax.f32 %v1035, 0.0
        %v1040 = vmax.f32 %v1036, 0.0
        %v1041 = vpack.c.bf16 %v1038, %v1037
        %v1042 = vpack.c.bf16 %v1040, %v1039
        %1043 = vmatpush.bf16.msra.mxu0 0
        %1044 = vmatpush.bf16.msra.mxu0 0
        %1045 = vmatpush.bf16.msra.mxu0 0
        %1046 = vmatpush.bf16.msra.mxu0 0
        %1047 = vmatpush.bf16.msra.mxu0 0
        %1048 = vmatpush.bf16.msra.mxu0 0
        %1049 = vmatpush.bf16.msra.mxu0 %v1042
        %1050 = vmatpush.bf16.msra.mxu0 %v1041
        %1051 = vmatmul.bf16.gmra.mxu0 %v528
        %v1052 = vpop.f32.mrf.mxu0
        %v1053 = vadd.f32 0.0, %v1052
        %v1054 = vpop.f32.mrf.mxu0
        %v1055 = vadd.f32 0.0, %v1054
        %1056 = vmatmul.bf16.gmra.mxu0 %v531
        %v1057 = vpop.f32.mrf.mxu0
        %v1058 = vadd.f32 0.0, %v1057
        %v1059 = vpop.f32.mrf.mxu0
        %v1060 = vadd.f32 0.0, %v1059
        %1061 = vdwg.mxu0
        %v1062 = vpack.c.bf16 %v1053, %v1053
        %v1063 = vpack.c.bf16 %v1055, %v1055
        %v1064 = vpack.c.bf16 %v1058, %v1058
        %v1065 = vpack.c.bf16 %v1060, %v1060
        %v1066 = vunpack.c.l.bf16 %v1062
        %v1067 = vunpack.c.l.bf16 %v1063
        %v1068 = vunpack.c.l.bf16 %v1064
        %v1069 = vunpack.c.l.bf16 %v1065
        %v1070 = vadd.f32 %v1066, %v596
        %v1071 = vadd.f32 %v1067, %v597
        %v1072 = vadd.f32 %v1068, %v598
        %v1073 = vadd.f32 %v1069, %v599
        %v1074 = vpack.c.bf16 %v1070, %v1070
        %v1075 = vpack.c.bf16 %v1071, %v1071
        %v1076 = vpack.c.bf16 %v1072, %v1072
        %v1077 = vpack.c.bf16 %v1073, %v1073
        %v1078 = vunpack.c.l.bf16 %v1074
        %v1079 = vunpack.c.l.bf16 %v1075
        %v1080 = vunpack.c.l.bf16 %v1076
        %v1081 = vunpack.c.l.bf16 %v1077
        %v1082 = vmax.f32 %v1078, 0.0
        %v1083 = vmax.f32 %v1079, 0.0
        %v1084 = vmax.f32 %v1080, 0.0
        %v1085 = vmax.f32 %v1081, 0.0
        %v1086 = vpack.c.bf16 %v1083, %v1082
        %v1087 = vpack.c.bf16 %v1085, %v1084
        %1088 = vmatpush.bf16.msra.mxu0 0
        %1089 = vmatpush.bf16.msra.mxu0 0
        %1090 = vmatpush.bf16.msra.mxu0 0
        %1091 = vmatpush.bf16.msra.mxu0 0
        %1092 = vmatpush.bf16.msra.mxu0 0
        %1093 = vmatpush.bf16.msra.mxu0 0
        %1094 = vmatpush.bf16.msra.mxu0 %v1087
        %1095 = vmatpush.bf16.msra.mxu0 %v1086
        %1096 = vmatmul.bf16.gmra.mxu0 %v629
        %v1097 = vpop.f32.mrf.mxu0
        %v1098 = vadd.f32 0.0, %v1097
        %v1099 = vpop.f32.mrf.mxu0
        %v1100 = vadd.f32 0.0, %v1099
        %1101 = vmatmul.bf16.gmra.mxu0 %v632
        %v1102 = vpop.f32.mrf.mxu0
        %v1103 = vadd.f32 0.0, %v1102
        %v1104 = vpop.f32.mrf.mxu0
        %v1105 = vadd.f32 0.0, %v1104
        %1106 = vdwg.mxu0
        %v1107 = vpack.c.bf16 %v1098, %v1098
        %v1108 = vpack.c.bf16 %v1100, %v1100
        %v1109 = vpack.c.bf16 %v1103, %v1103
        %v1110 = vpack.c.bf16 %v1105, %v1105
        %v1111 = vunpack.c.l.bf16 %v1107
        %v1112 = vunpack.c.l.bf16 %v1108
        %v1113 = vunpack.c.l.bf16 %v1109
        %v1114 = vunpack.c.l.bf16 %v1110
        %v1115 = vadd.f32 %v1111, %v697
        %v1116 = vadd.f32 %v1112, %v698
        %v1117 = vadd.f32 %v1113, %v699
        %v1118 = vadd.f32 %v1114, %v700
        %v1119 = vpack.c.bf16 %v1115, %v1115
        %v1120 = vpack.c.bf16 %v1116, %v1116
        %v1121 = vpack.c.bf16 %v1117, %v1117
        %v1122 = vpack.c.bf16 %v1118, %v1118
        %v1123 = vunpack.c.l.bf16 %v1119
        %v1124 = vunpack.c.l.bf16 %v1120
        %v1125 = vunpack.c.l.bf16 %v1121
        %v1126 = vunpack.c.l.bf16 %v1122
        %v1127 = vmax.f32 %v1123, 0.0
        %v1128 = vmax.f32 %v1124, 0.0
        %v1129 = vmax.f32 %v1125, 0.0
        %v1130 = vmax.f32 %v1126, 0.0
        %v1131 = vpack.c.bf16 %v1128, %v1127
        %v1132 = vpack.c.bf16 %v1130, %v1129
        %1133 = vmatpush.bf16.msra.mxu0 0
        %1134 = vmatpush.bf16.msra.mxu0 0
        %1135 = vmatpush.bf16.msra.mxu0 0
        %1136 = vmatpush.bf16.msra.mxu0 0
        %1137 = vmatpush.bf16.msra.mxu0 0
        %1138 = vmatpush.bf16.msra.mxu0 0
        %1139 = vmatpush.bf16.msra.mxu0 %v1132
        %1140 = vmatpush.bf16.msra.mxu0 %v1131
        %1141 = vmatmul.bf16.gmra.mxu0 %v730
        %v1142 = vpop.f32.mrf.mxu0
        %v1143 = vadd.f32 0.0, %v1142
        %v1144 = vpop.f32.mrf.mxu0
        %v1145 = vadd.f32 0.0, %v1144
        %1146 = vmatmul.bf16.gmra.mxu0 %v733
        %v1147 = vpop.f32.mrf.mxu0
        %v1148 = vadd.f32 0.0, %v1147
        %v1149 = vpop.f32.mrf.mxu0
        %v1150 = vadd.f32 0.0, %v1149
        %1151 = vdwg.mxu0
        %v1152 = vpack.c.bf16 %v1143, %v1143
        %v1153 = vpack.c.bf16 %v1145, %v1145
        %v1154 = vpack.c.bf16 %v1148, %v1148
        %v1155 = vpack.c.bf16 %v1150, %v1150
        %v1156 = vunpack.c.l.bf16 %v1152
        %v1157 = vunpack.c.l.bf16 %v1153
        %v1158 = vunpack.c.l.bf16 %v1154
        %v1159 = vunpack.c.l.bf16 %v1155
        %v1160 = vadd.f32 %v1156, %v798
        %v1161 = vadd.f32 %v1157, %v799
        %v1162 = vadd.f32 %v1158, %v800
        %v1163 = vadd.f32 %v1159, %v801
        %v1164 = vpack.c.bf16 %v1160, %v1160
        %v1165 = vpack.c.bf16 %v1161, %v1161
        %v1166 = vpack.c.bf16 %v1162, %v1162
        %v1167 = vpack.c.bf16 %v1163, %v1163
        %v1168 = vunpack.c.l.bf16 %v1164
        %v1169 = vunpack.c.l.bf16 %v1165
        %v1170 = vunpack.c.l.bf16 %v1166
        %v1171 = vunpack.c.l.bf16 %v1167
        %v1172 = vmax.f32 %v1168, 0.0
        %v1173 = vmax.f32 %v1169, 0.0
        %v1174 = vmax.f32 %v1170, 0.0
        %v1175 = vmax.f32 %v1171, 0.0
        %v1176 = vpack.c.bf16 %v1173, %v1172
        %v1177 = vpack.c.bf16 %v1175, %v1174
        %1178 = vmatpush.bf16.msra.mxu0 0
        %1179 = vmatpush.bf16.msra.mxu0 0
        %1180 = vmatpush.bf16.msra.mxu0 0
        %1181 = vmatpush.bf16.msra.mxu0 0
        %1182 = vmatpush.bf16.msra.mxu0 0
        %1183 = vmatpush.bf16.msra.mxu0 0
        %1184 = vmatpush.bf16.msra.mxu0 %v1177
        %1185 = vmatpush.bf16.msra.mxu0 %v1176
        %1186 = vmatmul.bf16.gmra.mxu0 %v821
        %v1187 = vpop.f32.mrf.mxu0
        %v1188 = vadd.f32 0.0, %v1187
        %v1189 = vpop.f32.mrf.mxu0
        %1190 = vdwg.mxu0
        %v1191 = vadd.f32 %v1188, %v839
        %1192 = vst [vmem:[%s380 + $0x4] sm:$0x3] %v1191
        %v1193 = vld [vmem:[%s385 + $0x6] sm:$0x3]
        %v1194 = vperm.slane %v1193, 0
        %v1195 = vmul.f32 %v439, %v1194
        %v1196 = vmul.f32 %v444, %v1194
        %v1197 = vmul.f32 %v449, %v1194
        %v1198 = vmul.f32 %v454, %v1194
        %v1199 = vperm.slane %v1193, 1
        %v1200 = vmul.f32 %v463, %v1199
        %v1201 = vmul.f32 %v467, %v1199
        %v1202 = vmul.f32 %v471, %v1199
        %v1203 = vmul.f32 %v475, %v1199
        %v1204 = vadd.f32 %v1195, %v1200
        %v1205 = vadd.f32 %v1196, %v1201
        %v1206 = vadd.f32 %v1197, %v1202
        %v1207 = vadd.f32 %v1198, %v1203
        %v1208 = vadd.f32 %v1204, %v489
        %v1209 = vadd.f32 %v1205, %v494
        %v1210 = vadd.f32 %v1206, %v499
        %v1211 = vadd.f32 %v1207, %v504
        %v1212 = vmax.f32 %v1208, 0.0
        %v1213 = vmax.f32 %v1209, 0.0
        %v1214 = vmax.f32 %v1210, 0.0
        %v1215 = vmax.f32 %v1211, 0.0
        %v1216 = vpack.c.bf16 %v1213, %v1212
        %v1217 = vpack.c.bf16 %v1215, %v1214
        %1218 = vmatpush.bf16.msra.mxu0 0
        %1219 = vmatpush.bf16.msra.mxu0 0
        %1220 = vmatpush.bf16.msra.mxu0 0
        %1221 = vmatpush.bf16.msra.mxu0 0
        %1222 = vmatpush.bf16.msra.mxu0 0
        %1223 = vmatpush.bf16.msra.mxu0 0
        %1224 = vmatpush.bf16.msra.mxu0 %v1217
        %1225 = vmatpush.bf16.msra.mxu0 %v1216
        %1226 = vmatmul.bf16.gmra.mxu0 %v528
        %v1227 = vpop.f32.mrf.mxu0
        %v1228 = vadd.f32 0.0, %v1227
        %v1229 = vpop.f32.mrf.mxu0
        %v1230 = vadd.f32 0.0, %v1229
        %1231 = vmatmul.bf16.gmra.mxu0 %v531
        %v1232 = vpop.f32.mrf.mxu0
        %v1233 = vadd.f32 0.0, %v1232
        %v1234 = vpop.f32.mrf.mxu0
        %v1235 = vadd.f32 0.0, %v1234
        %1236 = vdwg.mxu0
        %v1237 = vpack.c.bf16 %v1228, %v1228
        %v1238 = vpack.c.bf16 %v1230, %v1230
        %v1239 = vpack.c.bf16 %v1233, %v1233
        %v1240 = vpack.c.bf16 %v1235, %v1235
        %v1241 = vunpack.c.l.bf16 %v1237
        %v1242 = vunpack.c.l.bf16 %v1238
        %v1243 = vunpack.c.l.bf16 %v1239
        %v1244 = vunpack.c.l.bf16 %v1240
        %v1245 = vadd.f32 %v1241, %v596
        %v1246 = vadd.f32 %v1242, %v597
        %v1247 = vadd.f32 %v1243, %v598
        %v1248 = vadd.f32 %v1244, %v599
        %v1249 = vpack.c.bf16 %v1245, %v1245
        %v1250 = vpack.c.bf16 %v1246, %v1246
        %v1251 = vpack.c.bf16 %v1247, %v1247
        %v1252 = vpack.c.bf16 %v1248, %v1248
        %v1253 = vunpack.c.l.bf16 %v1249
        %v1254 = vunpack.c.l.bf16 %v1250
        %v1255 = vunpack.c.l.bf16 %v1251
        %v1256 = vunpack.c.l.bf16 %v1252
        %v1257 = vmax.f32 %v1253, 0.0
        %v1258 = vmax.f32 %v1254, 0.0
        %v1259 = vmax.f32 %v1255, 0.0
        %v1260 = vmax.f32 %v1256, 0.0
        %v1261 = vpack.c.bf16 %v1258, %v1257
        %v1262 = vpack.c.bf16 %v1260, %v1259
        %1263 = vmatpush.bf16.msra.mxu0 0
        %1264 = vmatpush.bf16.msra.mxu0 0
        %1265 = vmatpush.bf16.msra.mxu0 0
        %1266 = vmatpush.bf16.msra.mxu0 0
        %1267 = vmatpush.bf16.msra.mxu0 0
        %1268 = vmatpush.bf16.msra.mxu0 0
        %1269 = vmatpush.bf16.msra.mxu0 %v1262
        %1270 = vmatpush.bf16.msra.mxu0 %v1261
        %1271 = vmatmul.bf16.gmra.mxu0 %v629
        %v1272 = vpop.f32.mrf.mxu0
        %v1273 = vadd.f32 0.0, %v1272
        %v1274 = vpop.f32.mrf.mxu0
        %v1275 = vadd.f32 0.0, %v1274
        %1276 = vmatmul.bf16.gmra.mxu0 %v632
        %v1277 = vpop.f32.mrf.mxu0
        %v1278 = vadd.f32 0.0, %v1277
        %v1279 = vpop.f32.mrf.mxu0
        %v1280 = vadd.f32 0.0, %v1279
        %1281 = vdwg.mxu0
        %v1282 = vpack.c.bf16 %v1273, %v1273
        %v1283 = vpack.c.bf16 %v1275, %v1275
        %v1284 = vpack.c.bf16 %v1278, %v1278
        %v1285 = vpack.c.bf16 %v1280, %v1280
        %v1286 = vunpack.c.l.bf16 %v1282
        %v1287 = vunpack.c.l.bf16 %v1283
        %v1288 = vunpack.c.l.bf16 %v1284
        %v1289 = vunpack.c.l.bf16 %v1285
        %v1290 = vadd.f32 %v1286, %v697
        %v1291 = vadd.f32 %v1287, %v698
        %v1292 = vadd.f32 %v1288, %v699
        %v1293 = vadd.f32 %v1289, %v700
        %v1294 = vpack.c.bf16 %v1290, %v1290
        %v1295 = vpack.c.bf16 %v1291, %v1291
        %v1296 = vpack.c.bf16 %v1292, %v1292
        %v1297 = vpack.c.bf16 %v1293, %v1293
        %v1298 = vunpack.c.l.bf16 %v1294
        %v1299 = vunpack.c.l.bf16 %v1295
        %v1300 = vunpack.c.l.bf16 %v1296
        %v1301 = vunpack.c.l.bf16 %v1297
        %v1302 = vmax.f32 %v1298, 0.0
        %v1303 = vmax.f32 %v1299, 0.0
        %v1304 = vmax.f32 %v1300, 0.0
        %v1305 = vmax.f32 %v1301, 0.0
        %v1306 = vpack.c.bf16 %v1303, %v1302
        %v1307 = vpack.c.bf16 %v1305, %v1304
        %1308 = vmatpush.bf16.msra.mxu0 0
        %1309 = vmatpush.bf16.msra.mxu0 0
        %1310 = vmatpush.bf16.msra.mxu0 0
        %1311 = vmatpush.bf16.msra.mxu0 0
        %1312 = vmatpush.bf16.msra.mxu0 0
        %1313 = vmatpush.bf16.msra.mxu0 0
        %1314 = vmatpush.bf16.msra.mxu0 %v1307
        %1315 = vmatpush.bf16.msra.mxu0 %v1306
        %1316 = vmatmul.bf16.gmra.mxu0 %v730
        %v1317 = vpop.f32.mrf.mxu0
        %v1318 = vadd.f32 0.0, %v1317
        %v1319 = vpop.f32.mrf.mxu0
        %v1320 = vadd.f32 0.0, %v1319
        %1321 = vmatmul.bf16.gmra.mxu0 %v733
        %v1322 = vpop.f32.mrf.mxu0
        %v1323 = vadd.f32 0.0, %v1322
        %v1324 = vpop.f32.mrf.mxu0
        %v1325 = vadd.f32 0.0, %v1324
        %1326 = vdwg.mxu0
        %v1327 = vpack.c.bf16 %v1318, %v1318
        %v1328 = vpack.c.bf16 %v1320, %v1320
        %v1329 = vpack.c.bf16 %v1323, %v1323
        %v1330 = vpack.c.bf16 %v1325, %v1325
        %v1331 = vunpack.c.l.bf16 %v1327
        %v1332 = vunpack.c.l.bf16 %v1328
        %v1333 = vunpack.c.l.bf16 %v1329
        %v1334 = vunpack.c.l.bf16 %v1330
        %v1335 = vadd.f32 %v1331, %v798
        %v1336 = vadd.f32 %v1332, %v799
        %v1337 = vadd.f32 %v1333, %v800
        %v1338 = vadd.f32 %v1334, %v801
        %v1339 = vpack.c.bf16 %v1335, %v1335
        %v1340 = vpack.c.bf16 %v1336, %v1336
        %v1341 = vpack.c.bf16 %v1337, %v1337
        %v1342 = vpack.c.bf16 %v1338, %v1338
        %v1343 = vunpack.c.l.bf16 %v1339
        %v1344 = vunpack.c.l.bf16 %v1340
        %v1345 = vunpack.c.l.bf16 %v1341
        %v1346 = vunpack.c.l.bf16 %v1342
        %v1347 = vmax.f32 %v1343, 0.0
        %v1348 = vmax.f32 %v1344, 0.0
        %v1349 = vmax.f32 %v1345, 0.0
        %v1350 = vmax.f32 %v1346, 0.0
        %v1351 = vpack.c.bf16 %v1348, %v1347
        %v1352 = vpack.c.bf16 %v1350, %v1349
        %1353 = vmatpush.bf16.msra.mxu0 0
        %1354 = vmatpush.bf16.msra.mxu0 0
        %1355 = vmatpush.bf16.msra.mxu0 0
        %1356 = vmatpush.bf16.msra.mxu0 0
        %1357 = vmatpush.bf16.msra.mxu0 0
        %1358 = vmatpush.bf16.msra.mxu0 0
        %1359 = vmatpush.bf16.msra.mxu0 %v1352
        %1360 = vmatpush.bf16.msra.mxu0 %v1351
        %1361 = vmatmul.bf16.gmra.mxu0 %v821
        %v1362 = vpop.f32.mrf.mxu0
        %v1363 = vadd.f32 0.0, %v1362
        %v1364 = vpop.f32.mrf.mxu0
        %1365 = vdwg.mxu0
        %v1366 = vadd.f32 %v1363, %v839
        %1367 = vst [vmem:[%s380 + $0x6] sm:$0x3] %v1366
        %s1368 = sand.u32 %s269, 1
        %s1369 = scalar_lea.sflag [#allocation3], %s1368
        %s1370 = sand.u32 %s269, 1
        %s1371 = smul.addr %s1370, 8
        %s1372 = scalar_lea.vmem [#allocation2], %s1371
        // Predicated region
        $region65: #{generator2_forward_fm.1} parent=63 // pred_check
          %p1373 = pneg %p279
        $region66: #{generator2_forward_fm.1} parent=63 // pred_check_branch
          %1375 = sbr.rel (%p1373) target = $region68
        $region67: #{generator2_forward_fm.1} parent=63 // pred_region
          %s1376 = smul.u32 4, %s25
          %1378 = vsyncadd %s1369, 0
          %s1379 = smul.addr %s1376, 2
          %s1380 = scalar_lea.hbm %s11, %s1379
          %s1382 = sshll.u32 %s1372, 4
          %s1383 = int_to_ptr.vmem [resolvable:$true] %s1382
          %s1384 = sshll.u32 %s1380, 4
          %s1385 = int_to_ptr.hbm [resolvable:$true] %s1384
          %1387 = dma.vmem_to_hbm [thread:$0]  %s1383, 128, %s1385, %s1369
        $region68: #{generator2_forward_fm.1} parent=63 // pred_fallthru
          _
      $region64: #{generator2_forward_fm.1} parent=5 // pred_fallthru
        _
      %p1388 = scmp.le.s32.totalorder 2, %s20
      // Predicated region
      $region69: #{generator2_forward_fm.1} parent=5 // pred_check
        %p1389 = pneg %p1388
      $region70: #{generator2_forward_fm.1} parent=5 // pred_check_branch
        %1391 = sbr.rel (%p1389) target = $region72
      $region71: #{generator2_forward_fm.1} parent=5 // pred_region
        %s1392 = ssub.s32 %s20, 2
        // Predicated region
        $region73: #{generator2_forward_fm.1} parent=71 // pred_check
          %p1393 = pneg %p285
        $region74: #{generator2_forward_fm.1} parent=71 // pred_check_branch
          %1395 = sbr.rel (%p1393) target = $region76
        $region75: #{generator2_forward_fm.1} parent=71 // pred_region
          %s1396 = sand.u32 %s270, 1
          %s1397 = scalar_lea.sflag [#allocation3], %s1396
          %s1398 = sand.u32 %s270, 1
          %s1399 = smul.addr %s1398, 8
          %s1400 = scalar_lea.vmem [#allocation2], %s1399
          %1402 = dma.done %s1397, 128
        $region76: #{generator2_forward_fm.1} parent=71 // pred_fallthru
          _
      $region72: #{generator2_forward_fm.1} parent=5 // pred_fallthru
        _
    $region6: #{generator2_forward_fm.1} parent=1 // loop_footer
      %s24 = sadd.s32 1, %s20
    $region7: #{generator2_forward_fm.1} parent=1 // loop_footer_branch
      %19 = sbr.rel target = $region3
    $region8: #{generator2_forward_fm.1} parent=1 // loop_exit
      _
    %1403 = vsyncpa [#allocation3], 1
    %s1404 = scalar_lea.sflag [#allocation3], 1
    %1405 = vsyncpa %s1404, 1

</llo_original>
